<compile_context>
chip_gen: v7x
topology: tpu7x:2x2x1
jax: 0.10.0
libtpu: 0.0.40
codegen_flags: <defaults>
</compile_context>

<pallas_src>
import jax
import jax.numpy as jnp
from jax import lax
from jax.experimental import pallas as pl
from jax.experimental.pallas import tpu as pltpu

# ---------------- small synthetic sizes consistent with the module ----------------
B    = 2           # batch
T    = 8           # sequence length
DOBS = 16          # observation feature dim (obs_shape[-1])
DACT = 4           # action dim
LOD  = 16          # latent_obs_dim
LSD  = 2 * LOD     # 32  (encoder output / GRU input)
HID  = 5 * LOD     # 80  (GRU hidden)
HENC = 32          # hidden units inside each EncoderSimple
HDEC = 32          # hidden units inside SimpleDecoder

HID_P = 128        # HID padded to one full 128-lane tile
TB    = T * B

# packed-weight column offsets (all 128-lane aligned bands)
C_E1  = 0          # block-diag [obs_enc w1 | act_enc w1]                 rows 0:20 used
C_E23 = 128        # folded blockdiag(oe_w2, ae_w2) @ e_w1                rows 0:64 used
C_WI  = 256        # fused GRU input weight (e_w2 folded in), gates r|z|n at +0/+128/+256
C_WH  = 640        # fused GRU hidden weight, gates r|z|n                 (width 384)
C_D1  = 1024       # decoder trunk
C_DMV = 1152       # merged decoder heads: mean at +0, variance at +128   (width 256)
NW    = 1408


def _relu(x):
    return jnp.maximum(x, 0.0)


def _elup1(x):
    # elu(x) + 1: positive "variance" activation used by SimpleDecoder
    return jnp.where(x > 0.0, x + 1.0, jnp.exp(x))


def _mmb(a_f32, w_bf16):
    # bf16 x bf16 MXU matmul with f32 accumulation; elementwise math stays f32.
    return jnp.dot(a_f32.astype(jnp.bfloat16), w_bf16,
                   preferred_element_type=jnp.float32)


# ---------------- kernel ----------------
def rnn_baseline_kernel(xin_ref, valid_ref, w_ref, b_ref, out_ref):
    # xin_ref: (TB, 128) lane-dense [obs | act | 0]   valid_ref: (TB, 1)
    # w_ref: (128, NW) bf16   b_ref: (1, NW) f32   out_ref: (TB, 256) [mean | var]
    def wband(c, width):
        return w_ref[:, c:c + width]

    def bband(c, width):
        return b_ref[:, c:c + width]

    # obs_masked_batch = obs_batch * obs_valid_batch  (only the first DOBS lanes masked)
    lane = lax.broadcasted_iota(jnp.int32, (TB, HID_P), 1)
    x = xin_ref[...] * jnp.where(lane < DOBS, valid_ref[...], 1.0)       # (TB, 128)

    # ---- encoders: block-diag obs/act layer-1, then folded (W_E2·W_E3) joint layer ----
    h1 = _relu(_mmb(x, wband(C_E1, 128)) + bband(C_E1, 128))             # [h_obs | h_act | 0]
    h2 = _relu(_mmb(h1, wband(C_E23, 128)) + bband(C_E23, 128))          # (TB, 128), cols 0:HENC live

    # ---- GRU: fused input projection (W_E4 folded in) for all steps ----
    gx = _mmb(h2, wband(C_WI, 3 * HID_P)) + bband(C_WI, 3 * HID_P)       # (TB, 384)

    # hoisted, loop-invariant hidden-weight band + bias (single load before the loop)
    wh   = wband(C_WH, 3 * HID_P)                                        # (128, 384) bf16
    b_hh = bband(C_WH, 3 * HID_P)                                        # (1, 384)   f32

    h = jnp.zeros((B, HID_P), jnp.float32)
    hs = []
    for t in range(T):                      # trace-time full unroll (T=8 static)
        xt = gx[t * B:(t + 1) * B, :]                                    # (B, 384)
        gh = _mmb(h, wh) + b_hh                                          # (B, 384)
        r = jax.nn.sigmoid(xt[:, 0:HID_P] + gh[:, 0:HID_P])
        z = jax.nn.sigmoid(xt[:, HID_P:2 * HID_P] + gh[:, HID_P:2 * HID_P])
        n = jnp.tanh(xt[:, 2 * HID_P:] + r * gh[:, 2 * HID_P:])
        h = (1.0 - z) * n + z * h                                        # padded lanes stay 0
        hs.append(h)

    zs = jnp.concatenate(hs, axis=0)                                     # (TB, 128), time-major

    # ---- SimpleDecoder: trunk + merged mean|variance heads, one 256-lane store ----
    hd = _relu(_mmb(zs, wband(C_D1, 128)) + bband(C_D1, 128))
    y = _mmb(hd, wband(C_DMV, 2 * HID_P)) + bband(C_DMV, 2 * HID_P)      # (TB, 256)
    out_ref[...] = jnp.concatenate(
        [y[:, 0:HID_P], _elup1(y[:, HID_P:2 * HID_P])], axis=-1)


# ---------------- parameters (deterministic synthetic init) ----------------
_PARAM_SHAPES = {
    "oe_w1": (DOBS, HENC), "oe_b1": (1, HENC), "oe_w2": (HENC, LOD), "oe_b2": (1, LOD),
    "ae_w1": (DACT, HENC), "ae_b1": (1, HENC), "ae_w2": (HENC, LOD), "ae_b2": (1, LOD),
    "e_w1": (LSD, HENC), "e_b1": (1, HENC), "e_w2": (HENC, LSD), "e_b2": (1, LSD),
    "wir": (LSD, HID), "wiz": (LSD, HID), "win": (LSD, HID),
    "whr": (HID, HID), "whz": (HID, HID), "whn": (HID, HID),
    "bir": (1, HID), "biz": (1, HID), "bin": (1, HID),
    "bhr": (1, HID), "bhz": (1, HID), "bhn": (1, HID),
    "d_w1": (HID, HDEC), "d_b1": (1, HDEC),
    "d_wm": (HDEC, DOBS), "d_bm": (1, DOBS),
    "d_wv": (HDEC, DOBS), "d_bv": (1, DOBS),
}


def init_params(key):
    names = list(_PARAM_SHAPES)
    keys = jax.random.split(key, len(names))
    return {n: 0.1 * jax.random.normal(k, _PARAM_SHAPES[n], dtype=jnp.float32)
            for n, k in zip(names, keys)}


def pack_params(p):
    """Pack/fold all weights into one lane-dense (128, NW) bf16 slab + one (1, NW) f32 bias row.

    Folds (valid while enc_out_norm is identity, see TODO above), done in f32 then cast:
      * W_E23  = blockdiag(oe_w2, ae_w2) @ e_w1 ;  b_E23 = [oe_b2|ae_b2] @ e_w1 + e_b1
      * W_I'_g = e_w2 @ wi_g              ;        b_I'_g = e_b2 @ wi_g + bi_g
    """
    W = jnp.zeros((HID_P, NW), jnp.float32)
    b = jnp.zeros((1, NW), jnp.float32)

    # stage 1: block-diagonal [obs_enc layer1 | act_enc layer1]
    W = W.at[0:DOBS, C_E1:C_E1 + HENC].set(p["oe_w1"])
    W = W.at[DOBS:DOBS + DACT, C_E1 + HENC:C_E1 + 2 * HENC].set(p["ae_w1"])
    b = b.at[:, C_E1:C_E1 + HENC].set(p["oe_b1"])
    b = b.at[:, C_E1 + HENC:C_E1 + 2 * HENC].set(p["ae_b1"])

    # stage 2 (folded): blockdiag(oe_w2, ae_w2) @ e_w1
    w2_blk = jnp.zeros((2 * HENC, LSD), jnp.float32)
    w2_blk = w2_blk.at[0:HENC, 0:LOD].set(p["oe_w2"])
    w2_blk = w2_blk.at[HENC:2 * HENC, LOD:LSD].set(p["ae_w2"])
    b2_cat = jnp.concatenate([p["oe_b2"], p["ae_b2"]], axis=-1)          # (1, LSD)
    W = W.at[0:2 * HENC, C_E23:C_E23 + HENC].set(w2_blk @ p["e_w1"])
    b = b.at[:, C_E23:C_E23 + HENC].set(b2_cat @ p["e_w1"] + p["e_b1"])

    # GRU weights; gate order (r, z, n) at 128-lane-aligned offsets; e_w2/e_b2 folded into input side
    gates = [("wir", "bir", "whr", "bhr"),
             ("wiz", "biz", "whz", "bhz"),
             ("win", "bin", "whn", "bhn")]
    for g, (wi, bi, wh, bh) in enumerate(gates):
        ci, ch = C_WI + g * HID_P, C_WH + g * HID_P
        W = W.at[0:HENC, ci:ci + HID].set(p["e_w2"] @ p[wi])
        b = b.at[:, ci:ci + HID].set(p["e_b2"] @ p[wi] + p[bi])
        W = W.at[0:HID, ch:ch + HID].set(p[wh])
        b = b.at[:, ch:ch + HID].set(p[bh])

    # decoder trunk + merged mean|variance heads
    W = W.at[0:HID, C_D1:C_D1 + HDEC].set(p["d_w1"])
    b = b.at[:, C_D1:C_D1 + HDEC].set(p["d_b1"])
    W = W.at[0:HDEC, C_DMV:C_DMV + DOBS].set(p["d_wm"])
    b = b.at[:, C_DMV:C_DMV + DOBS].set(p["d_bm"])
    W = W.at[0:HDEC, C_DMV + HID_P:C_DMV + HID_P + DOBS].set(p["d_wv"])
    b = b.at[:, C_DMV + HID_P:C_DMV + HID_P + DOBS].set(p["d_bv"])

    return W.astype(jnp.bfloat16), b


# ---------------- wrapper ----------------
@jax.jit
def rnn_baseline_forward(obs, act, obs_valid, w_packed, b_packed):
    # layout plumbing only: time-major flattened rows (t*B + b), one lane-dense input slab
    def time_major(x):
        return jnp.transpose(x, (1, 0, 2)).reshape(TB, x.shape[-1])

    xin = jnp.concatenate(
        [time_major(obs), time_major(act),
         jnp.zeros((TB, HID_P - DOBS - DACT), jnp.float32)], axis=-1)    # (TB, 128)
    valid = time_major(obs_valid)                                        # (TB, 1)

    out = pl.pallas_call(
        rnn_baseline_kernel,
        out_shape=jax.ShapeDtypeStruct((TB, 2 * HID_P), jnp.float32),
        in_specs=[pl.BlockSpec(memory_space=pltpu.MemorySpace.VMEM)] * 4,
        out_specs=pl.BlockSpec(memory_space=pltpu.MemorySpace.VMEM),
        cost_estimate=pl.CostEstimate(flops=5_767_168, transcendentals=8_192,
                                      bytes_accessed=390_720),
    )(xin, valid, w_packed, b_packed)

    out = out.reshape(T, B, 2 * HID_P)
    mean = jnp.transpose(out[:, :, 0:DOBS], (1, 0, 2))                   # (B, T, DOBS)
    var = jnp.transpose(out[:, :, HID_P:HID_P + DOBS], (1, 0, 2))        # (B, T, DOBS)
    return mean, var


# ---------------- pure-JAX reference (for correctness check) ----------------
def reference_forward(obs, act, obs_valid, p):
    def enc(x, w1, b1, w2, b2):
        return jnp.maximum(x @ w1 + b1, 0.0) @ w2 + b2

    obs_m = obs * obs_valid
    w_obs = enc(obs_m, p["oe_w1"], p["oe_b1"], p["oe_w2"], p["oe_b2"])
    w_act = enc(act, p["ae_w1"], p["ae_b1"], p["ae_w2"], p["ae_b2"])
    w = enc(jnp.concatenate([w_obs, w_act], -1),
            p["e_w1"], p["e_b1"], p["e_w2"], p["e_b2"])

    def gru_step(h, x_t):
        r = jax.nn.sigmoid(x_t @ p["wir"] + p["bir"] + h @ p["whr"] + p["bhr"])
        z = jax.nn.sigmoid(x_t @ p["wiz"] + p["biz"] + h @ p["whz"] + p["bhz"])
        n = jnp.tanh(x_t @ p["win"] + p["bin"] + r * (h @ p["whn"] + p["bhn"]))
        h_new = (1.0 - z) * n + z * h
        return h_new, h_new

    h0 = jnp.zeros((obs.shape[0], HID), jnp.float32)
    _, zseq = lax.scan(gru_step, h0, jnp.transpose(w, (1, 0, 2)))
    zs = jnp.transpose(zseq, (1, 0, 2))

    hd = jnp.maximum(zs @ p["d_w1"] + p["d_b1"], 0.0)
    mean = hd @ p["d_wm"] + p["d_bm"]
    pre = hd @ p["d_wv"] + p["d_bv"]
    var = jnp.where(pre > 0.0, pre + 1.0, jnp.exp(pre))
    return mean, var


if __name__ == "__main__":
    key = jax.random.PRNGKey(0)
    k_obs, k_act, k_val, k_par = jax.random.split(key, 4)

    obs = jax.random.normal(k_obs, (B, T, DOBS), dtype=jnp.float32)
    act = jax.random.normal(k_act, (B, T, DACT), dtype=jnp.float32)
    obs_valid = (jax.random.uniform(k_val, (B, T, 1)) > 0.2).astype(jnp.float32)

    params = init_params(k_par)
    w_packed, b_packed = pack_params(params)

    out_mean, out_var = rnn_baseline_forward(obs, act, obs_valid, w_packed, b_packed)
    jax.block_until_ready((out_mean, out_var))

    assert out_mean.shape == (B, T, DOBS) and out_var.shape == (B, T, DOBS)

    ref_mean, ref_var = reference_forward(obs, act, obs_valid, params)
    assert jnp.allclose(out_mean, ref_mean, atol=2e-2, rtol=2e-2), \
        float(jnp.max(jnp.abs(out_mean - ref_mean)))
    assert jnp.allclose(out_var, ref_var, atol=2e-2, rtol=2e-2), \
        float(jnp.max(jnp.abs(out_var - ref_var)))

    print("KERNEL_OK")
</pallas_src>

<mosaic_0001>
module attributes {stable_mosaic.version = 11 : i64} {
  func.func @rnn_baseline_kernel(%arg0: memref<16x128xf32, #tpu.memory_space<vmem>>, %arg1: memref<16x1xf32, #tpu.memory_space<vmem>>, %arg2: memref<128x1408xbf16, #tpu.memory_space<vmem>>, %arg3: memref<1x1408xf32, #tpu.memory_space<vmem>>, %arg4: memref<16x256xf32, #tpu.memory_space<vmem>>) attributes {dimension_semantics = [], scalar_prefetch = 0 : i64, scratch_operands = 0 : i64, tpu.core_type = #tpu.core_type<tc>} {
    %0 = tpu.iota {dimensions = array<i32: 1>} : vector<16x128xi32>
    %c0 = arith.constant 0 : index
    %c0_0 = arith.constant 0 : index
    %1 = vector.load %arg0[%c0, %c0_0] : memref<16x128xf32, #tpu.memory_space<vmem>>, vector<16x128xf32>
    %c16_i32 = arith.constant 16 : i32
    %2 = vector.broadcast %c16_i32 : i32 to vector<16x128xi32>
    %3 = arith.cmpi slt, %0, %2 : vector<16x128xi32>
    %c0_1 = arith.constant 0 : index
    %c0_2 = arith.constant 0 : index
    %4 = vector.load %arg1[%c0_1, %c0_2] : memref<16x1xf32, #tpu.memory_space<vmem>>, vector<16x1xf32>
    %cst = arith.constant 1.000000e+00 : f32
    %5 = vector.shape_cast %4 : vector<16x1xf32> to vector<16x1xf32>
    %6 = vector.broadcast %5 : vector<16x1xf32> to vector<16x128xf32>
    %7 = vector.broadcast %cst : f32 to vector<16x128xf32>
    %8 = arith.select %3, %6, %7 : vector<16x128xi1>, vector<16x128xf32>
    %9 = arith.mulf %1, %8 : vector<16x128xf32>
    %c0_3 = arith.constant 0 : index
    %c0_4 = arith.constant 0 : index
    %10 = vector.load %arg2[%c0_3, %c0_4] : memref<128x1408xbf16, #tpu.memory_space<vmem>>, vector<128x128xbf16>
    %11 = arith.truncf %9 : vector<16x128xf32> to vector<16x128xbf16>
    %cst_5 = arith.constant dense<0.000000e+00> : vector<16x128xf32>
    %12 = tpu.matmul %11, %10, %cst_5 {dimension_numbers = #tpu.dot_dimension_numbers<[1], [0], [0], [1], [0, 0, 1, 1], [], []>} : vector<16x128xbf16>, vector<128x128xbf16>, vector<16x128xf32> -> vector<16x128xf32>
    %c0_6 = arith.constant 0 : index
    %c0_7 = arith.constant 0 : index
    %13 = vector.load %arg3[%c0_6, %c0_7] : memref<1x1408xf32, #tpu.memory_space<vmem>>, vector<1x128xf32>
    %14 = vector.broadcast %13 : vector<1x128xf32> to vector<16x128xf32>
    %15 = arith.addf %12, %14 : vector<16x128xf32>
    %cst_8 = arith.constant 0.000000e+00 : f32
    %16 = vector.broadcast %cst_8 : f32 to vector<16x128xf32>
    %17 = arith.maximumf %15, %16 : vector<16x128xf32>
    %c0_9 = arith.constant 0 : index
    %c128 = arith.constant 128 : index
    %18 = vector.load %arg2[%c0_9, %c128] : memref<128x1408xbf16, #tpu.memory_space<vmem>>, vector<128x128xbf16>
    %19 = arith.truncf %17 : vector<16x128xf32> to vector<16x128xbf16>
    %cst_10 = arith.constant dense<0.000000e+00> : vector<16x128xf32>
    %20 = tpu.matmul %19, %18, %cst_10 {dimension_numbers = #tpu.dot_dimension_numbers<[1], [0], [0], [1], [0, 0, 1, 1], [], []>} : vector<16x128xbf16>, vector<128x128xbf16>, vector<16x128xf32> -> vector<16x128xf32>
    %c0_11 = arith.constant 0 : index
    %c128_12 = arith.constant 128 : index
    %21 = vector.load %arg3[%c0_11, %c128_12] : memref<1x1408xf32, #tpu.memory_space<vmem>>, vector<1x128xf32>
    %22 = vector.broadcast %21 : vector<1x128xf32> to vector<16x128xf32>
    %23 = arith.addf %20, %22 : vector<16x128xf32>
    %cst_13 = arith.constant 0.000000e+00 : f32
    %24 = vector.broadcast %cst_13 : f32 to vector<16x128xf32>
    %25 = arith.maximumf %23, %24 : vector<16x128xf32>
    %c0_14 = arith.constant 0 : index
    %c256 = arith.constant 256 : index
    %26 = vector.load %arg2[%c0_14, %c256] : memref<128x1408xbf16, #tpu.memory_space<vmem>>, vector<128x384xbf16>
    %27 = arith.truncf %25 : vector<16x128xf32> to vector<16x128xbf16>
    %cst_15 = arith.constant dense<0.000000e+00> : vector<16x384xf32>
    %28 = tpu.matmul %27, %26, %cst_15 {dimension_numbers = #tpu.dot_dimension_numbers<[1], [0], [0], [1], [0, 0, 1, 1], [], []>} : vector<16x128xbf16>, vector<128x384xbf16>, vector<16x384xf32> -> vector<16x384xf32>
    %c0_16 = arith.constant 0 : index
    %c256_17 = arith.constant 256 : index
    %29 = vector.load %arg3[%c0_16, %c256_17] : memref<1x1408xf32, #tpu.memory_space<vmem>>, vector<1x384xf32>
    %30 = vector.broadcast %29 : vector<1x384xf32> to vector<16x384xf32>
    %31 = arith.addf %28, %30 : vector<16x384xf32>
    %c0_18 = arith.constant 0 : index
    %c640 = arith.constant 640 : index
    %32 = vector.load %arg2[%c0_18, %c640] : memref<128x1408xbf16, #tpu.memory_space<vmem>>, vector<128x384xbf16>
    %c0_19 = arith.constant 0 : index
    %c640_20 = arith.constant 640 : index
    %33 = vector.load %arg3[%c0_19, %c640_20] : memref<1x1408xf32, #tpu.memory_space<vmem>>, vector<1x384xf32>
    %cst_21 = arith.constant 0.000000e+00 : f32
    %34 = vector.broadcast %cst_21 : f32 to vector<2x128xf32>
    %35 = vector.extract_strided_slice %31 {offsets = [0, 0], sizes = [2, 384], strides = [1, 1]} : vector<16x384xf32> to vector<2x384xf32>
    %36 = arith.truncf %34 : vector<2x128xf32> to vector<2x128xbf16>
    %cst_22 = arith.constant dense<0.000000e+00> : vector<2x384xf32>
    %37 = tpu.matmul %36, %32, %cst_22 {dimension_numbers = #tpu.dot_dimension_numbers<[1], [0], [0], [1], [0, 0, 1, 1], [], []>} : vector<2x128xbf16>, vector<128x384xbf16>, vector<2x384xf32> -> vector<2x384xf32>
    %38 = vector.broadcast %33 : vector<1x384xf32> to vector<2x384xf32>
    %39 = arith.addf %37, %38 : vector<2x384xf32>
    %40 = vector.extract_strided_slice %35 {offsets = [0, 0], sizes = [2, 128], strides = [1, 1]} : vector<2x384xf32> to vector<2x128xf32>
    %41 = vector.extract_strided_slice %39 {offsets = [0, 0], sizes = [2, 128], strides = [1, 1]} : vector<2x384xf32> to vector<2x128xf32>
    %42 = arith.addf %40, %41 : vector<2x128xf32>
    %43 = arith.negf %42 : vector<2x128xf32>
    %44 = math.exp %43 : vector<2x128xf32>
    %cst_23 = arith.constant 1.000000e+00 : f32
    %45 = vector.broadcast %cst_23 : f32 to vector<2x128xf32>
    %46 = arith.addf %45, %44 : vector<2x128xf32>
    %47 = arith.divf %45, %46 : vector<2x128xf32>
    %48 = vector.extract_strided_slice %35 {offsets = [0, 128], sizes = [2, 128], strides = [1, 1]} : vector<2x384xf32> to vector<2x128xf32>
    %49 = vector.extract_strided_slice %39 {offsets = [0, 128], sizes = [2, 128], strides = [1, 1]} : vector<2x384xf32> to vector<2x128xf32>
    %50 = arith.addf %48, %49 : vector<2x128xf32>
    %51 = arith.negf %50 : vector<2x128xf32>
    %52 = math.exp %51 : vector<2x128xf32>
    %cst_24 = arith.constant 1.000000e+00 : f32
    %53 = vector.broadcast %cst_24 : f32 to vector<2x128xf32>
    %54 = arith.addf %53, %52 : vector<2x128xf32>
    %55 = arith.divf %53, %54 : vector<2x128xf32>
    %56 = vector.extract_strided_slice %35 {offsets = [0, 256], sizes = [2, 128], strides = [1, 1]} : vector<2x384xf32> to vector<2x128xf32>
    %57 = vector.extract_strided_slice %39 {offsets = [0, 256], sizes = [2, 128], strides = [1, 1]} : vector<2x384xf32> to vector<2x128xf32>
    %58 = arith.mulf %47, %57 : vector<2x128xf32>
    %59 = arith.addf %56, %58 : vector<2x128xf32>
    %60 = math.tanh %59 : vector<2x128xf32>
    %cst_25 = arith.constant 1.000000e+00 : f32
    %61 = vector.broadcast %cst_25 : f32 to vector<2x128xf32>
    %62 = arith.subf %61, %55 : vector<2x128xf32>
    %63 = arith.mulf %62, %60 : vector<2x128xf32>
    %64 = arith.mulf %55, %34 : vector<2x128xf32>
    %65 = arith.addf %63, %64 : vector<2x128xf32>
    %66 = vector.extract_strided_slice %31 {offsets = [2, 0], sizes = [2, 384], strides = [1, 1]} : vector<16x384xf32> to vector<2x384xf32>
    %67 = arith.truncf %65 : vector<2x128xf32> to vector<2x128xbf16>
    %cst_26 = arith.constant dense<0.000000e+00> : vector<2x384xf32>
    %68 = tpu.matmul %67, %32, %cst_26 {dimension_numbers = #tpu.dot_dimension_numbers<[1], [0], [0], [1], [0, 0, 1, 1], [], []>} : vector<2x128xbf16>, vector<128x384xbf16>, vector<2x384xf32> -> vector<2x384xf32>
    %69 = vector.broadcast %33 : vector<1x384xf32> to vector<2x384xf32>
    %70 = arith.addf %68, %69 : vector<2x384xf32>
    %71 = vector.extract_strided_slice %66 {offsets = [0, 0], sizes = [2, 128], strides = [1, 1]} : vector<2x384xf32> to vector<2x128xf32>
    %72 = vector.extract_strided_slice %70 {offsets = [0, 0], sizes = [2, 128], strides = [1, 1]} : vector<2x384xf32> to vector<2x128xf32>
    %73 = arith.addf %71, %72 : vector<2x128xf32>
    %74 = arith.negf %73 : vector<2x128xf32>
    %75 = math.exp %74 : vector<2x128xf32>
    %cst_27 = arith.constant 1.000000e+00 : f32
    %76 = vector.broadcast %cst_27 : f32 to vector<2x128xf32>
    %77 = arith.addf %76, %75 : vector<2x128xf32>
    %78 = arith.divf %76, %77 : vector<2x128xf32>
    %79 = vector.extract_strided_slice %66 {offsets = [0, 128], sizes = [2, 128], strides = [1, 1]} : vector<2x384xf32> to vector<2x128xf32>
    %80 = vector.extract_strided_slice %70 {offsets = [0, 128], sizes = [2, 128], strides = [1, 1]} : vector<2x384xf32> to vector<2x128xf32>
    %81 = arith.addf %79, %80 : vector<2x128xf32>
    %82 = arith.negf %81 : vector<2x128xf32>
    %83 = math.exp %82 : vector<2x128xf32>
    %cst_28 = arith.constant 1.000000e+00 : f32
    %84 = vector.broadcast %cst_28 : f32 to vector<2x128xf32>
    %85 = arith.addf %84, %83 : vector<2x128xf32>
    %86 = arith.divf %84, %85 : vector<2x128xf32>
    %87 = vector.extract_strided_slice %66 {offsets = [0, 256], sizes = [2, 128], strides = [1, 1]} : vector<2x384xf32> to vector<2x128xf32>
    %88 = vector.extract_strided_slice %70 {offsets = [0, 256], sizes = [2, 128], strides = [1, 1]} : vector<2x384xf32> to vector<2x128xf32>
    %89 = arith.mulf %78, %88 : vector<2x128xf32>
    %90 = arith.addf %87, %89 : vector<2x128xf32>
    %91 = math.tanh %90 : vector<2x128xf32>
    %cst_29 = arith.constant 1.000000e+00 : f32
    %92 = vector.broadcast %cst_29 : f32 to vector<2x128xf32>
    %93 = arith.subf %92, %86 : vector<2x128xf32>
    %94 = arith.mulf %93, %91 : vector<2x128xf32>
    %95 = arith.mulf %86, %65 : vector<2x128xf32>
    %96 = arith.addf %94, %95 : vector<2x128xf32>
    %97 = vector.extract_strided_slice %31 {offsets = [4, 0], sizes = [2, 384], strides = [1, 1]} : vector<16x384xf32> to vector<2x384xf32>
    %98 = arith.truncf %96 : vector<2x128xf32> to vector<2x128xbf16>
    %cst_30 = arith.constant dense<0.000000e+00> : vector<2x384xf32>
    %99 = tpu.matmul %98, %32, %cst_30 {dimension_numbers = #tpu.dot_dimension_numbers<[1], [0], [0], [1], [0, 0, 1, 1], [], []>} : vector<2x128xbf16>, vector<128x384xbf16>, vector<2x384xf32> -> vector<2x384xf32>
    %100 = vector.broadcast %33 : vector<1x384xf32> to vector<2x384xf32>
    %101 = arith.addf %99, %100 : vector<2x384xf32>
    %102 = vector.extract_strided_slice %97 {offsets = [0, 0], sizes = [2, 128], strides = [1, 1]} : vector<2x384xf32> to vector<2x128xf32>
    %103 = vector.extract_strided_slice %101 {offsets = [0, 0], sizes = [2, 128], strides = [1, 1]} : vector<2x384xf32> to vector<2x128xf32>
    %104 = arith.addf %102, %103 : vector<2x128xf32>
    %105 = arith.negf %104 : vector<2x128xf32>
    %106 = math.exp %105 : vector<2x128xf32>
    %cst_31 = arith.constant 1.000000e+00 : f32
    %107 = vector.broadcast %cst_31 : f32 to vector<2x128xf32>
    %108 = arith.addf %107, %106 : vector<2x128xf32>
    %109 = arith.divf %107, %108 : vector<2x128xf32>
    %110 = vector.extract_strided_slice %97 {offsets = [0, 128], sizes = [2, 128], strides = [1, 1]} : vector<2x384xf32> to vector<2x128xf32>
    %111 = vector.extract_strided_slice %101 {offsets = [0, 128], sizes = [2, 128], strides = [1, 1]} : vector<2x384xf32> to vector<2x128xf32>
    %112 = arith.addf %110, %111 : vector<2x128xf32>
    %113 = arith.negf %112 : vector<2x128xf32>
    %114 = math.exp %113 : vector<2x128xf32>
    %cst_32 = arith.constant 1.000000e+00 : f32
    %115 = vector.broadcast %cst_32 : f32 to vector<2x128xf32>
    %116 = arith.addf %115, %114 : vector<2x128xf32>
    %117 = arith.divf %115, %116 : vector<2x128xf32>
    %118 = vector.extract_strided_slice %97 {offsets = [0, 256], sizes = [2, 128], strides = [1, 1]} : vector<2x384xf32> to vector<2x128xf32>
    %119 = vector.extract_strided_slice %101 {offsets = [0, 256], sizes = [2, 128], strides = [1, 1]} : vector<2x384xf32> to vector<2x128xf32>
    %120 = arith.mulf %109, %119 : vector<2x128xf32>
    %121 = arith.addf %118, %120 : vector<2x128xf32>
    %122 = math.tanh %121 : vector<2x128xf32>
    %cst_33 = arith.constant 1.000000e+00 : f32
    %123 = vector.broadcast %cst_33 : f32 to vector<2x128xf32>
    %124 = arith.subf %123, %117 : vector<2x128xf32>
    %125 = arith.mulf %124, %122 : vector<2x128xf32>
    %126 = arith.mulf %117, %96 : vector<2x128xf32>
    %127 = arith.addf %125, %126 : vector<2x128xf32>
    %128 = vector.extract_strided_slice %31 {offsets = [6, 0], sizes = [2, 384], strides = [1, 1]} : vector<16x384xf32> to vector<2x384xf32>
    %129 = arith.truncf %127 : vector<2x128xf32> to vector<2x128xbf16>
    %cst_34 = arith.constant dense<0.000000e+00> : vector<2x384xf32>
    %130 = tpu.matmul %129, %32, %cst_34 {dimension_numbers = #tpu.dot_dimension_numbers<[1], [0], [0], [1], [0, 0, 1, 1], [], []>} : vector<2x128xbf16>, vector<128x384xbf16>, vector<2x384xf32> -> vector<2x384xf32>
    %131 = vector.broadcast %33 : vector<1x384xf32> to vector<2x384xf32>
    %132 = arith.addf %130, %131 : vector<2x384xf32>
    %133 = vector.extract_strided_slice %128 {offsets = [0, 0], sizes = [2, 128], strides = [1, 1]} : vector<2x384xf32> to vector<2x128xf32>
    %134 = vector.extract_strided_slice %132 {offsets = [0, 0], sizes = [2, 128], strides = [1, 1]} : vector<2x384xf32> to vector<2x128xf32>
    %135 = arith.addf %133, %134 : vector<2x128xf32>
    %136 = arith.negf %135 : vector<2x128xf32>
    %137 = math.exp %136 : vector<2x128xf32>
    %cst_35 = arith.constant 1.000000e+00 : f32
    %138 = vector.broadcast %cst_35 : f32 to vector<2x128xf32>
    %139 = arith.addf %138, %137 : vector<2x128xf32>
    %140 = arith.divf %138, %139 : vector<2x128xf32>
    %141 = vector.extract_strided_slice %128 {offsets = [0, 128], sizes = [2, 128], strides = [1, 1]} : vector<2x384xf32> to vector<2x128xf32>
    %142 = vector.extract_strided_slice %132 {offsets = [0, 128], sizes = [2, 128], strides = [1, 1]} : vector<2x384xf32> to vector<2x128xf32>
    %143 = arith.addf %141, %142 : vector<2x128xf32>
    %144 = arith.negf %143 : vector<2x128xf32>
    %145 = math.exp %144 : vector<2x128xf32>
    %cst_36 = arith.constant 1.000000e+00 : f32
    %146 = vector.broadcast %cst_36 : f32 to vector<2x128xf32>
    %147 = arith.addf %146, %145 : vector<2x128xf32>
    %148 = arith.divf %146, %147 : vector<2x128xf32>
    %149 = vector.extract_strided_slice %128 {offsets = [0, 256], sizes = [2, 128], strides = [1, 1]} : vector<2x384xf32> to vector<2x128xf32>
    %150 = vector.extract_strided_slice %132 {offsets = [0, 256], sizes = [2, 128], strides = [1, 1]} : vector<2x384xf32> to vector<2x128xf32>
    %151 = arith.mulf %140, %150 : vector<2x128xf32>
    %152 = arith.addf %149, %151 : vector<2x128xf32>
    %153 = math.tanh %152 : vector<2x128xf32>
    %cst_37 = arith.constant 1.000000e+00 : f32
    %154 = vector.broadcast %cst_37 : f32 to vector<2x128xf32>
    %155 = arith.subf %154, %148 : vector<2x128xf32>
    %156 = arith.mulf %155, %153 : vector<2x128xf32>
    %157 = arith.mulf %148, %127 : vector<2x128xf32>
    %158 = arith.addf %156, %157 : vector<2x128xf32>
    %159 = vector.extract_strided_slice %31 {offsets = [8, 0], sizes = [2, 384], strides = [1, 1]} : vector<16x384xf32> to vector<2x384xf32>
    %160 = arith.truncf %158 : vector<2x128xf32> to vector<2x128xbf16>
    %cst_38 = arith.constant dense<0.000000e+00> : vector<2x384xf32>
    %161 = tpu.matmul %160, %32, %cst_38 {dimension_numbers = #tpu.dot_dimension_numbers<[1], [0], [0], [1], [0, 0, 1, 1], [], []>} : vector<2x128xbf16>, vector<128x384xbf16>, vector<2x384xf32> -> vector<2x384xf32>
    %162 = vector.broadcast %33 : vector<1x384xf32> to vector<2x384xf32>
    %163 = arith.addf %161, %162 : vector<2x384xf32>
    %164 = vector.extract_strided_slice %159 {offsets = [0, 0], sizes = [2, 128], strides = [1, 1]} : vector<2x384xf32> to vector<2x128xf32>
    %165 = vector.extract_strided_slice %163 {offsets = [0, 0], sizes = [2, 128], strides = [1, 1]} : vector<2x384xf32> to vector<2x128xf32>
    %166 = arith.addf %164, %165 : vector<2x128xf32>
    %167 = arith.negf %166 : vector<2x128xf32>
    %168 = math.exp %167 : vector<2x128xf32>
    %cst_39 = arith.constant 1.000000e+00 : f32
    %169 = vector.broadcast %cst_39 : f32 to vector<2x128xf32>
    %170 = arith.addf %169, %168 : vector<2x128xf32>
    %171 = arith.divf %169, %170 : vector<2x128xf32>
    %172 = vector.extract_strided_slice %159 {offsets = [0, 128], sizes = [2, 128], strides = [1, 1]} : vector<2x384xf32> to vector<2x128xf32>
    %173 = vector.extract_strided_slice %163 {offsets = [0, 128], sizes = [2, 128], strides = [1, 1]} : vector<2x384xf32> to vector<2x128xf32>
    %174 = arith.addf %172, %173 : vector<2x128xf32>
    %175 = arith.negf %174 : vector<2x128xf32>
    %176 = math.exp %175 : vector<2x128xf32>
    %cst_40 = arith.constant 1.000000e+00 : f32
    %177 = vector.broadcast %cst_40 : f32 to vector<2x128xf32>
    %178 = arith.addf %177, %176 : vector<2x128xf32>
    %179 = arith.divf %177, %178 : vector<2x128xf32>
    %180 = vector.extract_strided_slice %159 {offsets = [0, 256], sizes = [2, 128], strides = [1, 1]} : vector<2x384xf32> to vector<2x128xf32>
    %181 = vector.extract_strided_slice %163 {offsets = [0, 256], sizes = [2, 128], strides = [1, 1]} : vector<2x384xf32> to vector<2x128xf32>
    %182 = arith.mulf %171, %181 : vector<2x128xf32>
    %183 = arith.addf %180, %182 : vector<2x128xf32>
    %184 = math.tanh %183 : vector<2x128xf32>
    %cst_41 = arith.constant 1.000000e+00 : f32
    %185 = vector.broadcast %cst_41 : f32 to vector<2x128xf32>
    %186 = arith.subf %185, %179 : vector<2x128xf32>
    %187 = arith.mulf %186, %184 : vector<2x128xf32>
    %188 = arith.mulf %179, %158 : vector<2x128xf32>
    %189 = arith.addf %187, %188 : vector<2x128xf32>
    %190 = vector.extract_strided_slice %31 {offsets = [10, 0], sizes = [2, 384], strides = [1, 1]} : vector<16x384xf32> to vector<2x384xf32>
    %191 = arith.truncf %189 : vector<2x128xf32> to vector<2x128xbf16>
    %cst_42 = arith.constant dense<0.000000e+00> : vector<2x384xf32>
    %192 = tpu.matmul %191, %32, %cst_42 {dimension_numbers = #tpu.dot_dimension_numbers<[1], [0], [0], [1], [0, 0, 1, 1], [], []>} : vector<2x128xbf16>, vector<128x384xbf16>, vector<2x384xf32> -> vector<2x384xf32>
    %193 = vector.broadcast %33 : vector<1x384xf32> to vector<2x384xf32>
    %194 = arith.addf %192, %193 : vector<2x384xf32>
    %195 = vector.extract_strided_slice %190 {offsets = [0, 0], sizes = [2, 128], strides = [1, 1]} : vector<2x384xf32> to vector<2x128xf32>
    %196 = vector.extract_strided_slice %194 {offsets = [0, 0], sizes = [2, 128], strides = [1, 1]} : vector<2x384xf32> to vector<2x128xf32>
    %197 = arith.addf %195, %196 : vector<2x128xf32>
    %198 = arith.negf %197 : vector<2x128xf32>
    %199 = math.exp %198 : vector<2x128xf32>
    %cst_43 = arith.constant 1.000000e+00 : f32
    %200 = vector.broadcast %cst_43 : f32 to vector<2x128xf32>
    %201 = arith.addf %200, %199 : vector<2x128xf32>
    %202 = arith.divf %200, %201 : vector<2x128xf32>
    %203 = vector.extract_strided_slice %190 {offsets = [0, 128], sizes = [2, 128], strides = [1, 1]} : vector<2x384xf32> to vector<2x128xf32>
    %204 = vector.extract_strided_slice %194 {offsets = [0, 128], sizes = [2, 128], strides = [1, 1]} : vector<2x384xf32> to vector<2x128xf32>
    %205 = arith.addf %203, %204 : vector<2x128xf32>
    %206 = arith.negf %205 : vector<2x128xf32>
    %207 = math.exp %206 : vector<2x128xf32>
    %cst_44 = arith.constant 1.000000e+00 : f32
    %208 = vector.broadcast %cst_44 : f32 to vector<2x128xf32>
    %209 = arith.addf %208, %207 : vector<2x128xf32>
    %210 = arith.divf %208, %209 : vector<2x128xf32>
    %211 = vector.extract_strided_slice %190 {offsets = [0, 256], sizes = [2, 128], strides = [1, 1]} : vector<2x384xf32> to vector<2x128xf32>
    %212 = vector.extract_strided_slice %194 {offsets = [0, 256], sizes = [2, 128], strides = [1, 1]} : vector<2x384xf32> to vector<2x128xf32>
    %213 = arith.mulf %202, %212 : vector<2x128xf32>
    %214 = arith.addf %211, %213 : vector<2x128xf32>
    %215 = math.tanh %214 : vector<2x128xf32>
    %cst_45 = arith.constant 1.000000e+00 : f32
    %216 = vector.broadcast %cst_45 : f32 to vector<2x128xf32>
    %217 = arith.subf %216, %210 : vector<2x128xf32>
    %218 = arith.mulf %217, %215 : vector<2x128xf32>
    %219 = arith.mulf %210, %189 : vector<2x128xf32>
    %220 = arith.addf %218, %219 : vector<2x128xf32>
    %221 = vector.extract_strided_slice %31 {offsets = [12, 0], sizes = [2, 384], strides = [1, 1]} : vector<16x384xf32> to vector<2x384xf32>
    %222 = arith.truncf %220 : vector<2x128xf32> to vector<2x128xbf16>
    %cst_46 = arith.constant dense<0.000000e+00> : vector<2x384xf32>
    %223 = tpu.matmul %222, %32, %cst_46 {dimension_numbers = #tpu.dot_dimension_numbers<[1], [0], [0], [1], [0, 0, 1, 1], [], []>} : vector<2x128xbf16>, vector<128x384xbf16>, vector<2x384xf32> -> vector<2x384xf32>
    %224 = vector.broadcast %33 : vector<1x384xf32> to vector<2x384xf32>
    %225 = arith.addf %223, %224 : vector<2x384xf32>
    %226 = vector.extract_strided_slice %221 {offsets = [0, 0], sizes = [2, 128], strides = [1, 1]} : vector<2x384xf32> to vector<2x128xf32>
    %227 = vector.extract_strided_slice %225 {offsets = [0, 0], sizes = [2, 128], strides = [1, 1]} : vector<2x384xf32> to vector<2x128xf32>
    %228 = arith.addf %226, %227 : vector<2x128xf32>
    %229 = arith.negf %228 : vector<2x128xf32>
    %230 = math.exp %229 : vector<2x128xf32>
    %cst_47 = arith.constant 1.000000e+00 : f32
    %231 = vector.broadcast %cst_47 : f32 to vector<2x128xf32>
    %232 = arith.addf %231, %230 : vector<2x128xf32>
    %233 = arith.divf %231, %232 : vector<2x128xf32>
    %234 = vector.extract_strided_slice %221 {offsets = [0, 128], sizes = [2, 128], strides = [1, 1]} : vector<2x384xf32> to vector<2x128xf32>
    %235 = vector.extract_strided_slice %225 {offsets = [0, 128], sizes = [2, 128], strides = [1, 1]} : vector<2x384xf32> to vector<2x128xf32>
    %236 = arith.addf %234, %235 : vector<2x128xf32>
    %237 = arith.negf %236 : vector<2x128xf32>
    %238 = math.exp %237 : vector<2x128xf32>
    %cst_48 = arith.constant 1.000000e+00 : f32
    %239 = vector.broadcast %cst_48 : f32 to vector<2x128xf32>
    %240 = arith.addf %239, %238 : vector<2x128xf32>
    %241 = arith.divf %239, %240 : vector<2x128xf32>
    %242 = vector.extract_strided_slice %221 {offsets = [0, 256], sizes = [2, 128], strides = [1, 1]} : vector<2x384xf32> to vector<2x128xf32>
    %243 = vector.extract_strided_slice %225 {offsets = [0, 256], sizes = [2, 128], strides = [1, 1]} : vector<2x384xf32> to vector<2x128xf32>
    %244 = arith.mulf %233, %243 : vector<2x128xf32>
    %245 = arith.addf %242, %244 : vector<2x128xf32>
    %246 = math.tanh %245 : vector<2x128xf32>
    %cst_49 = arith.constant 1.000000e+00 : f32
    %247 = vector.broadcast %cst_49 : f32 to vector<2x128xf32>
    %248 = arith.subf %247, %241 : vector<2x128xf32>
    %249 = arith.mulf %248, %246 : vector<2x128xf32>
    %250 = arith.mulf %241, %220 : vector<2x128xf32>
    %251 = arith.addf %249, %250 : vector<2x128xf32>
    %252 = vector.extract_strided_slice %31 {offsets = [14, 0], sizes = [2, 384], strides = [1, 1]} : vector<16x384xf32> to vector<2x384xf32>
    %253 = arith.truncf %251 : vector<2x128xf32> to vector<2x128xbf16>
    %cst_50 = arith.constant dense<0.000000e+00> : vector<2x384xf32>
    %254 = tpu.matmul %253, %32, %cst_50 {dimension_numbers = #tpu.dot_dimension_numbers<[1], [0], [0], [1], [0, 0, 1, 1], [], []>} : vector<2x128xbf16>, vector<128x384xbf16>, vector<2x384xf32> -> vector<2x384xf32>
    %255 = vector.broadcast %33 : vector<1x384xf32> to vector<2x384xf32>
    %256 = arith.addf %254, %255 : vector<2x384xf32>
    %257 = vector.extract_strided_slice %252 {offsets = [0, 0], sizes = [2, 128], strides = [1, 1]} : vector<2x384xf32> to vector<2x128xf32>
    %258 = vector.extract_strided_slice %256 {offsets = [0, 0], sizes = [2, 128], strides = [1, 1]} : vector<2x384xf32> to vector<2x128xf32>
    %259 = arith.addf %257, %258 : vector<2x128xf32>
    %260 = arith.negf %259 : vector<2x128xf32>
    %261 = math.exp %260 : vector<2x128xf32>
    %cst_51 = arith.constant 1.000000e+00 : f32
    %262 = vector.broadcast %cst_51 : f32 to vector<2x128xf32>
    %263 = arith.addf %262, %261 : vector<2x128xf32>
    %264 = arith.divf %262, %263 : vector<2x128xf32>
    %265 = vector.extract_strided_slice %252 {offsets = [0, 128], sizes = [2, 128], strides = [1, 1]} : vector<2x384xf32> to vector<2x128xf32>
    %266 = vector.extract_strided_slice %256 {offsets = [0, 128], sizes = [2, 128], strides = [1, 1]} : vector<2x384xf32> to vector<2x128xf32>
    %267 = arith.addf %265, %266 : vector<2x128xf32>
    %268 = arith.negf %267 : vector<2x128xf32>
    %269 = math.exp %268 : vector<2x128xf32>
    %cst_52 = arith.constant 1.000000e+00 : f32
    %270 = vector.broadcast %cst_52 : f32 to vector<2x128xf32>
    %271 = arith.addf %270, %269 : vector<2x128xf32>
    %272 = arith.divf %270, %271 : vector<2x128xf32>
    %273 = vector.extract_strided_slice %252 {offsets = [0, 256], sizes = [2, 128], strides = [1, 1]} : vector<2x384xf32> to vector<2x128xf32>
    %274 = vector.extract_strided_slice %256 {offsets = [0, 256], sizes = [2, 128], strides = [1, 1]} : vector<2x384xf32> to vector<2x128xf32>
    %275 = arith.mulf %264, %274 : vector<2x128xf32>
    %276 = arith.addf %273, %275 : vector<2x128xf32>
    %277 = math.tanh %276 : vector<2x128xf32>
    %cst_53 = arith.constant 1.000000e+00 : f32
    %278 = vector.broadcast %cst_53 : f32 to vector<2x128xf32>
    %279 = arith.subf %278, %272 : vector<2x128xf32>
    %280 = arith.mulf %279, %277 : vector<2x128xf32>
    %281 = arith.mulf %272, %251 : vector<2x128xf32>
    %282 = arith.addf %280, %281 : vector<2x128xf32>
    %283 = tpu.concatenate %65, %96, %127, %158, %189, %220, %251, %282 in 0 : vector<2x128xf32>, vector<2x128xf32>, vector<2x128xf32>, vector<2x128xf32>, vector<2x128xf32>, vector<2x128xf32>, vector<2x128xf32>, vector<2x128xf32> -> vector<16x128xf32>
    %c0_54 = arith.constant 0 : index
    %c1024 = arith.constant 1024 : index
    %284 = vector.load %arg2[%c0_54, %c1024] : memref<128x1408xbf16, #tpu.memory_space<vmem>>, vector<128x128xbf16>
    %285 = arith.truncf %283 : vector<16x128xf32> to vector<16x128xbf16>
    %cst_55 = arith.constant dense<0.000000e+00> : vector<16x128xf32>
    %286 = tpu.matmul %285, %284, %cst_55 {dimension_numbers = #tpu.dot_dimension_numbers<[1], [0], [0], [1], [0, 0, 1, 1], [], []>} : vector<16x128xbf16>, vector<128x128xbf16>, vector<16x128xf32> -> vector<16x128xf32>
    %c0_56 = arith.constant 0 : index
    %c1024_57 = arith.constant 1024 : index
    %287 = vector.load %arg3[%c0_56, %c1024_57] : memref<1x1408xf32, #tpu.memory_space<vmem>>, vector<1x128xf32>
    %288 = vector.broadcast %287 : vector<1x128xf32> to vector<16x128xf32>
    %289 = arith.addf %286, %288 : vector<16x128xf32>
    %cst_58 = arith.constant 0.000000e+00 : f32
    %290 = vector.broadcast %cst_58 : f32 to vector<16x128xf32>
    %291 = arith.maximumf %289, %290 : vector<16x128xf32>
    %c0_59 = arith.constant 0 : index
    %c1152 = arith.constant 1152 : index
    %292 = vector.load %arg2[%c0_59, %c1152] : memref<128x1408xbf16, #tpu.memory_space<vmem>>, vector<128x256xbf16>
    %293 = arith.truncf %291 : vector<16x128xf32> to vector<16x128xbf16>
    %cst_60 = arith.constant dense<0.000000e+00> : vector<16x256xf32>
    %294 = tpu.matmul %293, %292, %cst_60 {dimension_numbers = #tpu.dot_dimension_numbers<[1], [0], [0], [1], [0, 0, 1, 1], [], []>} : vector<16x128xbf16>, vector<128x256xbf16>, vector<16x256xf32> -> vector<16x256xf32>
    %c0_61 = arith.constant 0 : index
    %c1152_62 = arith.constant 1152 : index
    %295 = vector.load %arg3[%c0_61, %c1152_62] : memref<1x1408xf32, #tpu.memory_space<vmem>>, vector<1x256xf32>
    %296 = vector.broadcast %295 : vector<1x256xf32> to vector<16x256xf32>
    %297 = arith.addf %294, %296 : vector<16x256xf32>
    %298 = vector.extract_strided_slice %297 {offsets = [0, 0], sizes = [16, 128], strides = [1, 1]} : vector<16x256xf32> to vector<16x128xf32>
    %299 = vector.extract_strided_slice %297 {offsets = [0, 128], sizes = [16, 128], strides = [1, 1]} : vector<16x256xf32> to vector<16x128xf32>
    %cst_63 = arith.constant 0.000000e+00 : f32
    %300 = vector.broadcast %cst_63 : f32 to vector<16x128xf32>
    %301 = arith.cmpf ogt, %299, %300 : vector<16x128xf32>
    %cst_64 = arith.constant 1.000000e+00 : f32
    %302 = vector.broadcast %cst_64 : f32 to vector<16x128xf32>
    %303 = arith.addf %299, %302 : vector<16x128xf32>
    %304 = math.exp %299 : vector<16x128xf32>
    %305 = arith.select %301, %303, %304 : vector<16x128xi1>, vector<16x128xf32>
    %306 = tpu.concatenate %298, %305 in 1 : vector<16x128xf32>, vector<16x128xf32> -> vector<16x256xf32>
    %c0_65 = arith.constant 0 : index
    %c0_66 = arith.constant 0 : index
    %307 = vector.load %arg4[%c0_65, %c0_66] : memref<16x256xf32, #tpu.memory_space<vmem>>, vector<16x256xf32>
    tpu.vector_store %arg4[%c0_65, %c0_66], %306 {strides = array<i32>} : memref<16x256xf32, #tpu.memory_space<vmem>>, vector<16x256xf32>,
    return
  }
}

</mosaic_0001>

<llo_original>
// kernel: rnn_baseline_forward.1
$region0: #{rnn_baseline_forward.1}
  #allocation0 [shape = 'u32[]', space=smem, size = 0x4, offset = 0x4, fixed_abs, tag = 'smem constant byte address 0x4 - core index']
  #allocation1 [shape = 'u32[144,128]{1,0:T(1,128)}', space=vmem, size = 0x12000, scoped, tag = 'internal scratch']
  %s0 = inlined_call_operand.vmem [shape: f32[16,128], index: 0, kind: input, shape index: {}]
  %s1 = inlined_call_operand.vmem [shape: f32[16,1], index: 1, kind: input, shape index: {}]
  %s2 = inlined_call_operand.hbm [shape: bf16[128,1408], index: 2, kind: input, shape index: {}]
  %s3 = inlined_call_operand.vmem [shape: f32[1,1408], index: 3, kind: input, shape index: {}]
  %s4 = inlined_call_operand.vmem [shape: f32[16,256], index: 4, kind: output, shape index: {}]
  %s5 = sld [smem:[#allocation0]]
  $region30: #{rnn_baseline_forward.1} parent=0
    _
  %s7 = ssub.s32 1, %s5
  %s8 = scalar_select 0, %s7, %s5
  $region1: #{rnn_baseline_forward.1} parent=0
    #allocation2 [shape = 'u8[360448]{0}', space=vmem, size = 0x58000, scoped, tag = 'input window, operand 2, single buffered']
    #allocation3 [shape = 's32[1]{0}', space=sflag, size = 0x4, scoped, tag = 'scoped memory for rnn_baseline_forward.1']
    %9 = vsyncpa [#allocation3], 0
    // Predicated region
    $region2: #{rnn_baseline_forward.1} parent=1 // pred_check
      _
    $region3: #{rnn_baseline_forward.1} parent=1 // pred_check_branch
      %11 = sbr.rel (0) target = $region5
    $region4: #{rnn_baseline_forward.1} parent=1 // pred_region
      _
    $region5: #{rnn_baseline_forward.1} parent=1 // pred_fallthru
      _
    // Predicated region
    $region6: #{rnn_baseline_forward.1} parent=1 // pred_check
      _
    $region7: #{rnn_baseline_forward.1} parent=1 // pred_check_branch
      %13 = sbr.rel (0) target = $region9
    $region8: #{rnn_baseline_forward.1} parent=1 // pred_region
      _
    $region9: #{rnn_baseline_forward.1} parent=1 // pred_fallthru
      _
    // Predicated region
    $region10: #{rnn_baseline_forward.1} parent=1 // pred_check
      _
    $region11: #{rnn_baseline_forward.1} parent=1 // pred_check_branch
      %15 = sbr.rel (0) target = $region13
    $region12: #{rnn_baseline_forward.1} parent=1 // pred_region
      %s17 = ssub.s32 11264, 11264
      %18 = vsyncadd [#allocation3], %s17
      %s19 = sshll.u32 [#allocation2], 4
      %s20 = int_to_ptr.vmem [resolvable:$true] %s19
      %25 = dma.hbm_to_vmem [thread:$0]  %s2, 11264, %s20, [#allocation3], 704, 704, 44
    $region13: #{rnn_baseline_forward.1} parent=1 // pred_fallthru
      _
    // Predicated region
    $region14: #{rnn_baseline_forward.1} parent=1 // pred_check
      _
    $region15: #{rnn_baseline_forward.1} parent=1 // pred_check_branch
      %27 = sbr.rel (0) target = $region17
    $region16: #{rnn_baseline_forward.1} parent=1 // pred_region
      _
    $region17: #{rnn_baseline_forward.1} parent=1 // pred_fallthru
      _
    // Predicated region
    $region18: #{rnn_baseline_forward.1} parent=1 // pred_check
      _
    $region19: #{rnn_baseline_forward.1} parent=1 // pred_check_branch
      %29 = sbr.rel (0) target = $region21
    $region20: #{rnn_baseline_forward.1} parent=1 // pred_region
      %30 = dma.done [#allocation3], 11264
    $region21: #{rnn_baseline_forward.1} parent=1 // pred_fallthru
      _
    %v32 = vlaneseq
    %v33 = vand.u32 %v32, 127
    %v34 = vld [vmem:[%s0] sm:$0xff]
    %v35 = vld [vmem:[%s0 + $0x8] sm:$0xff]
    %vm36 = vcmp.lt.s32.totalorder %v33, 16
    %v37 = vld [vmem:[%s1] sm:$0xff]
    %v38 = vld [vmem:[%s1 + $0x8] sm:$0xff]
    %40 = vset.pattern.permute.xlu0 0
    %41 = vperm.xlu0 %40, %v37
    %v42 = vpop.permute.xlu0 %41
    %45 = vset.pattern.permute.xlu0 0
    %46 = vperm.xlu0 %45, %v38
    %v47 = vpop.permute.xlu0 %46
    %v49 = vsel %vm36, %v42, 1.0
    %v50 = vsel %vm36, %v47, 1.0
    %v51 = vmul.f32 %v34, %v49
    %v52 = vmul.f32 %v35, %v50
    %v53 = vld [vmem:[#allocation2] sm:$0xf]
    %v54 = vld [vmem:[#allocation2 + $0x2c] sm:$0xf]
    %v55 = vld [vmem:[#allocation2 + $0x58] sm:$0xf]
    %v56 = vld [vmem:[#allocation2 + $0x84] sm:$0xf]
    %v57 = vld [vmem:[#allocation2 + $0xb0] sm:$0xf]
    %v58 = vld [vmem:[#allocation2 + $0xdc] sm:$0xf]
    %v59 = vld [vmem:[#allocation2 + $0x108] sm:$0xf]
    %v60 = vld [vmem:[#allocation2 + $0x134] sm:$0xf]
    %v61 = vld [vmem:[#allocation2 + $0x160] sm:$0xf]
    %v62 = vld [vmem:[#allocation2 + $0x18c] sm:$0xf]
    %v63 = vld [vmem:[#allocation2 + $0x1b8] sm:$0xf]
    %v64 = vld [vmem:[#allocation2 + $0x1e4] sm:$0xf]
    %v65 = vld [vmem:[#allocation2 + $0x210] sm:$0xf]
    %v66 = vld [vmem:[#allocation2 + $0x23c] sm:$0xf]
    %v67 = vld [vmem:[#allocation2 + $0x268] sm:$0xf]
    %v68 = vld [vmem:[#allocation2 + $0x294] sm:$0xf]
    %v69 = vpack.c.bf16 %v52, %v51
    %v70 = vld [vmem:[%s3] sm:$0x1]
    %v72 = vlaneseq
    %v73 = vshrl.u32 %v72, 7
    %v74 = vsub.s32 0, %v73
    %v75 = vrot.slane %v70, %v74
    %v93 = vunpack.c.l.b16 %v53
    %v94 = vunpack.c.l.b16 %v54
    %v95 = vunpack.c.l.b16 %v55
    %v96 = vunpack.c.l.b16 %v56
    %v97 = vunpack.c.l.b16 %v57
    %v98 = vunpack.c.l.b16 %v58
    %v99 = vunpack.c.l.b16 %v59
    %v100 = vunpack.c.l.b16 %v60
    %v101 = vunpack.c.l.b16 %v61
    %v102 = vunpack.c.l.b16 %v62
    %v103 = vunpack.c.l.b16 %v63
    %v104 = vunpack.c.l.b16 %v64
    %v105 = vunpack.c.l.b16 %v65
    %v106 = vunpack.c.l.b16 %v66
    %v107 = vunpack.c.l.b16 %v67
    %v108 = vunpack.c.l.b16 %v68
    %v109 = vpack.c.b16 %v94, %v93
    %v110 = vpack.c.b16 %v96, %v95
    %v111 = vpack.c.b16 %v98, %v97
    %v112 = vpack.c.b16 %v100, %v99
    %v113 = vpack.c.b16 %v102, %v101
    %v114 = vpack.c.b16 %v104, %v103
    %v115 = vpack.c.b16 %v106, %v105
    %v116 = vpack.c.b16 %v108, %v107
    %125 = vmatprep.subr.bf16.mxu0 0
    %126 = vmatpush1.bf16.msra.mxu0 %v109
    %127 = vmatprep.subr.bf16.mxu0 0
    %128 = vmatpush1.bf16.msra.mxu0 %v110
    %129 = vmatprep.subr.bf16.mxu0 0
    %130 = vmatpush1.bf16.msra.mxu0 %v111
    %131 = vmatprep.subr.bf16.mxu0 0
    %132 = vmatpush1.bf16.msra.mxu0 %v112
    %133 = vmatprep.subr.bf16.mxu0 0
    %134 = vmatpush1.bf16.msra.mxu0 %v113
    %135 = vmatprep.subr.bf16.mxu0 0
    %136 = vmatpush1.bf16.msra.mxu0 %v114
    %137 = vmatprep.subr.bf16.mxu0 0
    %138 = vmatpush1.bf16.msra.mxu0 %v115
    %139 = vmatprep.subr.bf16.mxu0 0
    %140 = vmatpush1.bf16.msra.mxu0 %v116
    %141 = vmatprep.subr.bf16.mxu0 0
    %142 = vmatpush1.bf16.msra.mxu0 0
    %143 = vmatprep.subr.bf16.mxu0 0
    %144 = vmatpush1.bf16.msra.mxu0 0
    %145 = vmatprep.subr.bf16.mxu0 0
    %146 = vmatpush1.bf16.msra.mxu0 0
    %147 = vmatprep.subr.bf16.mxu0 0
    %148 = vmatpush1.bf16.msra.mxu0 0
    %149 = vmatprep.subr.bf16.mxu0 0
    %150 = vmatpush1.bf16.msra.mxu0 0
    %151 = vmatprep.subr.bf16.mxu0 0
    %152 = vmatpush1.bf16.msra.mxu0 0
    %153 = vmatprep.subr.bf16.mxu0 0
    %154 = vmatpush1.bf16.msra.mxu0 0
    %155 = vmatprep.subr.bf16.mxu0 0
    %156 = vmatpush1.bf16.msra.mxu0 0
    %157 = vmatprep.mubr.bf16.mxu0 0
    %158 = vmatmul.mubr.bf16.gmra.mrb[0].mxu0 %v69
    %v159 = vpop.f32.mrb[0].mxu0
    %v160 = vadd.f32 %v75, %v159
    %v161 = vpop.f32.mrb[0].mxu0
    %v162 = vpop.f32.mrb[0].mxu0
    %v163 = vadd.f32 %v75, %v162
    %v164 = vpop.f32.mrb[0].mxu0
    %165 = vdwg.mxu0
    %v166 = vmax.f32 %v160, 0.0
    %v167 = vmax.f32 %v163, 0.0
    %v168 = vld [vmem:[#allocation2 + $0x4] sm:$0xf]
    %v169 = vld [vmem:[#allocation2 + $0x30] sm:$0xf]
    %v170 = vld [vmem:[#allocation2 + $0x5c] sm:$0xf]
    %v171 = vld [vmem:[#allocation2 + $0x88] sm:$0xf]
    %v172 = vld [vmem:[#allocation2 + $0xb4] sm:$0xf]
    %v173 = vld [vmem:[#allocation2 + $0xe0] sm:$0xf]
    %v174 = vld [vmem:[#allocation2 + $0x10c] sm:$0xf]
    %v175 = vld [vmem:[#allocation2 + $0x138] sm:$0xf]
    %v176 = vld [vmem:[#allocation2 + $0x164] sm:$0xf]
    %v177 = vld [vmem:[#allocation2 + $0x190] sm:$0xf]
    %v178 = vld [vmem:[#allocation2 + $0x1bc] sm:$0xf]
    %v179 = vld [vmem:[#allocation2 + $0x1e8] sm:$0xf]
    %v180 = vld [vmem:[#allocation2 + $0x214] sm:$0xf]
    %v181 = vld [vmem:[#allocation2 + $0x240] sm:$0xf]
    %v182 = vld [vmem:[#allocation2 + $0x26c] sm:$0xf]
    %v183 = vld [vmem:[#allocation2 + $0x298] sm:$0xf]
    %v184 = vpack.c.bf16 %v167, %v166
    %v185 = vld [vmem:[%s3 + $0x1] sm:$0x1]
    %v187 = vlaneseq
    %v188 = vshrl.u32 %v187, 7
    %v189 = vsub.s32 0, %v188
    %v190 = vrot.slane %v185, %v189
    %v208 = vunpack.c.l.b16 %v168
    %v209 = vunpack.c.l.b16 %v169
    %v210 = vunpack.c.l.b16 %v170
    %v211 = vunpack.c.l.b16 %v171
    %v212 = vunpack.c.l.b16 %v172
    %v213 = vunpack.c.l.b16 %v173
    %v214 = vunpack.c.l.b16 %v174
    %v215 = vunpack.c.l.b16 %v175
    %v216 = vunpack.c.l.b16 %v176
    %v217 = vunpack.c.l.b16 %v177
    %v218 = vunpack.c.l.b16 %v178
    %v219 = vunpack.c.l.b16 %v179
    %v220 = vunpack.c.l.b16 %v180
    %v221 = vunpack.c.l.b16 %v181
    %v222 = vunpack.c.l.b16 %v182
    %v223 = vunpack.c.l.b16 %v183
    %v224 = vpack.c.b16 %v209, %v208
    %v225 = vpack.c.b16 %v211, %v210
    %v226 = vpack.c.b16 %v213, %v212
    %v227 = vpack.c.b16 %v215, %v214
    %v228 = vpack.c.b16 %v217, %v216
    %v229 = vpack.c.b16 %v219, %v218
    %v230 = vpack.c.b16 %v221, %v220
    %v231 = vpack.c.b16 %v223, %v222
    %240 = vmatprep.subr.bf16.mxu0 0
    %241 = vmatpush1.bf16.msra.mxu0 %v224
    %242 = vmatprep.subr.bf16.mxu0 0
    %243 = vmatpush1.bf16.msra.mxu0 %v225
    %244 = vmatprep.subr.bf16.mxu0 0
    %245 = vmatpush1.bf16.msra.mxu0 %v226
    %246 = vmatprep.subr.bf16.mxu0 0
    %247 = vmatpush1.bf16.msra.mxu0 %v227
    %248 = vmatprep.subr.bf16.mxu0 0
    %249 = vmatpush1.bf16.msra.mxu0 %v228
    %250 = vmatprep.subr.bf16.mxu0 0
    %251 = vmatpush1.bf16.msra.mxu0 %v229
    %252 = vmatprep.subr.bf16.mxu0 0
    %253 = vmatpush1.bf16.msra.mxu0 %v230
    %254 = vmatprep.subr.bf16.mxu0 0
    %255 = vmatpush1.bf16.msra.mxu0 %v231
    %256 = vmatprep.subr.bf16.mxu0 0
    %257 = vmatpush1.bf16.msra.mxu0 0
    %258 = vmatprep.subr.bf16.mxu0 0
    %259 = vmatpush1.bf16.msra.mxu0 0
    %260 = vmatprep.subr.bf16.mxu0 0
    %261 = vmatpush1.bf16.msra.mxu0 0
    %262 = vmatprep.subr.bf16.mxu0 0
    %263 = vmatpush1.bf16.msra.mxu0 0
    %264 = vmatprep.subr.bf16.mxu0 0
    %265 = vmatpush1.bf16.msra.mxu0 0
    %266 = vmatprep.subr.bf16.mxu0 0
    %267 = vmatpush1.bf16.msra.mxu0 0
    %268 = vmatprep.subr.bf16.mxu0 0
    %269 = vmatpush1.bf16.msra.mxu0 0
    %270 = vmatprep.subr.bf16.mxu0 0
    %271 = vmatpush1.bf16.msra.mxu0 0
    %272 = vmatprep.mubr.bf16.mxu0 0
    %273 = vmatmul.mubr.bf16.gmra.mrb[0].mxu0 %v184
    %v274 = vpop.f32.mrb[0].mxu0
    %v275 = vadd.f32 %v190, %v274
    %v276 = vpop.f32.mrb[0].mxu0
    %v277 = vpop.f32.mrb[0].mxu0
    %v278 = vadd.f32 %v190, %v277
    %v279 = vpop.f32.mrb[0].mxu0
    %280 = vdwg.mxu0
    %v281 = vmax.f32 %v275, 0.0
    %v282 = vmax.f32 %v278, 0.0
    %v283 = vld [vmem:[#allocation2 + $0x8] sm:$0xff]
    %v284 = vld [vmem:[#allocation2 + $0x10] sm:$0xf]
    %v285 = vld [vmem:[#allocation2 + $0x34] sm:$0xff]
    %v286 = vld [vmem:[#allocation2 + $0x3c] sm:$0xf]
    %v287 = vld [vmem:[#allocation2 + $0x60] sm:$0xff]
    %v288 = vld [vmem:[#allocation2 + $0x68] sm:$0xf]
    %v289 = vld [vmem:[#allocation2 + $0x8c] sm:$0xff]
    %v290 = vld [vmem:[#allocation2 + $0x94] sm:$0xf]
    %v291 = vld [vmem:[#allocation2 + $0xb8] sm:$0xff]
    %v292 = vld [vmem:[#allocation2 + $0xc0] sm:$0xf]
    %v293 = vld [vmem:[#allocation2 + $0xe4] sm:$0xff]
    %v294 = vld [vmem:[#allocation2 + $0xec] sm:$0xf]
    %v295 = vld [vmem:[#allocation2 + $0x110] sm:$0xff]
    %v296 = vld [vmem:[#allocation2 + $0x118] sm:$0xf]
    %v297 = vld [vmem:[#allocation2 + $0x13c] sm:$0xff]
    %v298 = vld [vmem:[#allocation2 + $0x144] sm:$0xf]
    %v299 = vld [vmem:[#allocation2 + $0x168] sm:$0xff]
    %v300 = vld [vmem:[#allocation2 + $0x170] sm:$0xf]
    %v301 = vld [vmem:[#allocation2 + $0x194] sm:$0xff]
    %v302 = vld [vmem:[#allocation2 + $0x19c] sm:$0xf]
    %v303 = vld [vmem:[#allocation2 + $0x1c0] sm:$0xff]
    %v304 = vld [vmem:[#allocation2 + $0x1c8] sm:$0xf]
    %v305 = vld [vmem:[#allocation2 + $0x1ec] sm:$0xff]
    %v306 = vld [vmem:[#allocation2 + $0x1f4] sm:$0xf]
    %v307 = vld [vmem:[#allocation2 + $0x218] sm:$0xff]
    %v308 = vld [vmem:[#allocation2 + $0x220] sm:$0xf]
    %v309 = vld [vmem:[#allocation2 + $0x244] sm:$0xff]
    %v310 = vld [vmem:[#allocation2 + $0x24c] sm:$0xf]
    %v311 = vld [vmem:[#allocation2 + $0x270] sm:$0xff]
    %v312 = vld [vmem:[#allocation2 + $0x278] sm:$0xf]
    %v313 = vld [vmem:[#allocation2 + $0x29c] sm:$0xff]
    %v314 = vld [vmem:[#allocation2 + $0x2a4] sm:$0xf]
    %v315 = vpack.c.bf16 %v282, %v281
    %v316 = vld [vmem:[%s3 + $0x2] sm:$0x7]
    %v318 = vlaneseq
    %v319 = vshrl.u32 %v318, 7
    %v320 = vsub.s32 0, %v319
    %v321 = vrot.slane %v316, %v320
    %v322 = vlaneseq
    %v323 = vshrl.u32 %v322, 7
    %v324 = vsub.s32 1, %v323
    %v325 = vrot.slane %v316, %v324
    %v326 = vlaneseq
    %v327 = vshrl.u32 %v326, 7
    %v328 = vsub.s32 2, %v327
    %v329 = vrot.slane %v316, %v328
    %v365 = vunpack.c.l.b16 %v283
    %v366 = vunpack.c.h.b16 %v283
    %v367 = vunpack.c.l.b16 %v284
    %v368 = vunpack.c.l.b16 %v285
    %v369 = vunpack.c.h.b16 %v285
    %v370 = vunpack.c.l.b16 %v286
    %v371 = vunpack.c.l.b16 %v287
    %v372 = vunpack.c.h.b16 %v287
    %v373 = vunpack.c.l.b16 %v288
    %v374 = vunpack.c.l.b16 %v289
    %v375 = vunpack.c.h.b16 %v289
    %v376 = vunpack.c.l.b16 %v290
    %v377 = vunpack.c.l.b16 %v291
    %v378 = vunpack.c.h.b16 %v291
    %v379 = vunpack.c.l.b16 %v292
    %v380 = vunpack.c.l.b16 %v293
    %v381 = vunpack.c.h.b16 %v293
    %v382 = vunpack.c.l.b16 %v294
    %v383 = vunpack.c.l.b16 %v295
    %v384 = vunpack.c.h.b16 %v295
    %v385 = vunpack.c.l.b16 %v296
    %v386 = vunpack.c.l.b16 %v297
    %v387 = vunpack.c.h.b16 %v297
    %v388 = vunpack.c.l.b16 %v298
    %v389 = vunpack.c.l.b16 %v299
    %v390 = vunpack.c.h.b16 %v299
    %v391 = vunpack.c.l.b16 %v300
    %v392 = vunpack.c.l.b16 %v301
    %v393 = vunpack.c.h.b16 %v301
    %v394 = vunpack.c.l.b16 %v302
    %v395 = vunpack.c.l.b16 %v303
    %v396 = vunpack.c.h.b16 %v303
    %v397 = vunpack.c.l.b16 %v304
    %v398 = vunpack.c.l.b16 %v305
    %v399 = vunpack.c.h.b16 %v305
    %v400 = vunpack.c.l.b16 %v306
    %v401 = vunpack.c.l.b16 %v307
    %v402 = vunpack.c.h.b16 %v307
    %v403 = vunpack.c.l.b16 %v308
    %v404 = vunpack.c.l.b16 %v309
    %v405 = vunpack.c.h.b16 %v309
    %v406 = vunpack.c.l.b16 %v310
    %v407 = vunpack.c.l.b16 %v311
    %v408 = vunpack.c.h.b16 %v311
    %v409 = vunpack.c.l.b16 %v312
    %v410 = vunpack.c.l.b16 %v313
    %v411 = vunpack.c.h.b16 %v313
    %v412 = vunpack.c.l.b16 %v314
    %v413 = vpack.c.b16 %v368, %v365
    %v414 = vpack.c.b16 %v369, %v366
    %v415 = vpack.c.b16 %v370, %v367
    %v416 = vpack.c.b16 %v374, %v371
    %v417 = vpack.c.b16 %v375, %v372
    %v418 = vpack.c.b16 %v376, %v373
    %v419 = vpack.c.b16 %v380, %v377
    %v420 = vpack.c.b16 %v381, %v378
    %v421 = vpack.c.b16 %v382, %v379
    %v422 = vpack.c.b16 %v386, %v383
    %v423 = vpack.c.b16 %v387, %v384
    %v424 = vpack.c.b16 %v388, %v385
    %v425 = vpack.c.b16 %v392, %v389
    %v426 = vpack.c.b16 %v393, %v390
    %v427 = vpack.c.b16 %v394, %v391
    %v428 = vpack.c.b16 %v398, %v395
    %v429 = vpack.c.b16 %v399, %v396
    %v430 = vpack.c.b16 %v400, %v397
    %v431 = vpack.c.b16 %v404, %v401
    %v432 = vpack.c.b16 %v405, %v402
    %v433 = vpack.c.b16 %v406, %v403
    %v434 = vpack.c.b16 %v410, %v407
    %v435 = vpack.c.b16 %v411, %v408
    %v436 = vpack.c.b16 %v412, %v409
    %461 = vmatprep.subr.bf16.mxu0 %v414
    %462 = vmatpush1.bf16.msra.mxu0 %v413
    %463 = vmatprep.subr.bf16.mxu0 %v417
    %464 = vmatpush1.bf16.msra.mxu0 %v416
    %465 = vmatprep.subr.bf16.mxu0 %v420
    %466 = vmatpush1.bf16.msra.mxu0 %v419
    %467 = vmatprep.subr.bf16.mxu0 %v423
    %468 = vmatpush1.bf16.msra.mxu0 %v422
    %469 = vmatprep.subr.bf16.mxu0 %v426
    %470 = vmatpush1.bf16.msra.mxu0 %v425
    %471 = vmatprep.subr.bf16.mxu0 %v429
    %472 = vmatpush1.bf16.msra.mxu0 %v428
    %473 = vmatprep.subr.bf16.mxu0 %v432
    %474 = vmatpush1.bf16.msra.mxu0 %v431
    %475 = vmatprep.subr.bf16.mxu0 %v435
    %476 = vmatpush1.bf16.msra.mxu0 %v434
    %477 = vmatprep.subr.bf16.mxu0 0
    %478 = vmatpush1.bf16.msra.mxu0 0
    %479 = vmatprep.subr.bf16.mxu0 0
    %480 = vmatpush1.bf16.msra.mxu0 0
    %481 = vmatprep.subr.bf16.mxu0 0
    %482 = vmatpush1.bf16.msra.mxu0 0
    %483 = vmatprep.subr.bf16.mxu0 0
    %484 = vmatpush1.bf16.msra.mxu0 0
    %485 = vmatprep.subr.bf16.mxu0 0
    %486 = vmatpush1.bf16.msra.mxu0 0
    %487 = vmatprep.subr.bf16.mxu0 0
    %488 = vmatpush1.bf16.msra.mxu0 0
    %489 = vmatprep.subr.bf16.mxu0 0
    %490 = vmatpush1.bf16.msra.mxu0 0
    %491 = vmatprep.subr.bf16.mxu0 0
    %492 = vmatpush1.bf16.msra.mxu0 0
    %493 = vmatprep.mubr.bf16.mxu0 0
    %494 = vmatmul.mubr.bf16.gmra.mrb[0].mxu0 %v315
    %v495 = vpop.f32.mrb[0].mxu0
    %v496 = vadd.f32 %v321, %v495
    %v497 = vpop.f32.mrb[0].mxu0
    %v498 = vadd.f32 %v325, %v497
    %v499 = vpop.f32.mrb[0].mxu0
    %v500 = vadd.f32 %v321, %v499
    %v501 = vpop.f32.mrb[0].mxu0
    %v502 = vadd.f32 %v325, %v501
    %503 = vdwg.mxu0
    %504 = vmatprep.subr.bf16.mxu0 0
    %505 = vmatpush1.bf16.msra.mxu0 %v415
    %506 = vmatprep.subr.bf16.mxu0 0
    %507 = vmatpush1.bf16.msra.mxu0 %v418
    %508 = vmatprep.subr.bf16.mxu0 0
    %509 = vmatpush1.bf16.msra.mxu0 %v421
    %510 = vmatprep.subr.bf16.mxu0 0
    %511 = vmatpush1.bf16.msra.mxu0 %v424
    %512 = vmatprep.subr.bf16.mxu0 0
    %513 = vmatpush1.bf16.msra.mxu0 %v427
    %514 = vmatprep.subr.bf16.mxu0 0
    %515 = vmatpush1.bf16.msra.mxu0 %v430
    %516 = vmatprep.subr.bf16.mxu0 0
    %517 = vmatpush1.bf16.msra.mxu0 %v433
    %518 = vmatprep.subr.bf16.mxu0 0
    %519 = vmatpush1.bf16.msra.mxu0 %v436
    %520 = vmatprep.subr.bf16.mxu0 0
    %521 = vmatpush1.bf16.msra.mxu0 0
    %522 = vmatprep.subr.bf16.mxu0 0
    %523 = vmatpush1.bf16.msra.mxu0 0
    %524 = vmatprep.subr.bf16.mxu0 0
    %525 = vmatpush1.bf16.msra.mxu0 0
    %526 = vmatprep.subr.bf16.mxu0 0
    %527 = vmatpush1.bf16.msra.mxu0 0
    %528 = vmatprep.subr.bf16.mxu0 0
    %529 = vmatpush1.bf16.msra.mxu0 0
    %530 = vmatprep.subr.bf16.mxu0 0
    %531 = vmatpush1.bf16.msra.mxu0 0
    %532 = vmatprep.subr.bf16.mxu0 0
    %533 = vmatpush1.bf16.msra.mxu0 0
    %534 = vmatprep.subr.bf16.mxu0 0
    %535 = vmatpush1.bf16.msra.mxu0 0
    %536 = vmatprep.mubr.bf16.mxu0 0
    %537 = vmatmul.mubr.bf16.gmra.mrb[0].mxu0 %v315
    %v538 = vpop.f32.mrb[0].mxu0
    %v539 = vadd.f32 %v329, %v538
    %v540 = vpop.f32.mrb[0].mxu0
    %v541 = vpop.f32.mrb[0].mxu0
    %v542 = vadd.f32 %v329, %v541
    %v543 = vpop.f32.mrb[0].mxu0
    %544 = vdwg.mxu0
    %v545 = vld [vmem:[#allocation2 + $0x14] sm:$0xff]
    %v546 = vld [vmem:[#allocation2 + $0x1c] sm:$0xf]
    %v547 = vld [vmem:[#allocation2 + $0x40] sm:$0xff]
    %v548 = vld [vmem:[#allocation2 + $0x48] sm:$0xf]
    %v549 = vld [vmem:[#allocation2 + $0x6c] sm:$0xff]
    %v550 = vld [vmem:[#allocation2 + $0x74] sm:$0xf]
    %v551 = vld [vmem:[#allocation2 + $0x98] sm:$0xff]
    %v552 = vld [vmem:[#allocation2 + $0xa0] sm:$0xf]
    %v553 = vld [vmem:[#allocation2 + $0xc4] sm:$0xff]
    %v554 = vld [vmem:[#allocation2 + $0xcc] sm:$0xf]
    %v555 = vld [vmem:[#allocation2 + $0xf0] sm:$0xff]
    %v556 = vld [vmem:[#allocation2 + $0xf8] sm:$0xf]
    %v557 = vld [vmem:[#allocation2 + $0x11c] sm:$0xff]
    %v558 = vld [vmem:[#allocation2 + $0x124] sm:$0xf]
    %v559 = vld [vmem:[#allocation2 + $0x148] sm:$0xff]
    %v560 = vld [vmem:[#allocation2 + $0x150] sm:$0xf]
    %v561 = vld [vmem:[#allocation2 + $0x174] sm:$0xff]
    %v562 = vld [vmem:[#allocation2 + $0x17c] sm:$0xf]
    %v563 = vld [vmem:[#allocation2 + $0x1a0] sm:$0xff]
    %v564 = vld [vmem:[#allocation2 + $0x1a8] sm:$0xf]
    %v565 = vld [vmem:[#allocation2 + $0x1cc] sm:$0xff]
    %v566 = vld [vmem:[#allocation2 + $0x1d4] sm:$0xf]
    %v567 = vld [vmem:[#allocation2 + $0x1f8] sm:$0xff]
    %v568 = vld [vmem:[#allocation2 + $0x200] sm:$0xf]
    %v569 = vld [vmem:[#allocation2 + $0x224] sm:$0xff]
    %v570 = vld [vmem:[#allocation2 + $0x22c] sm:$0xf]
    %v571 = vld [vmem:[#allocation2 + $0x250] sm:$0xff]
    %v572 = vld [vmem:[#allocation2 + $0x258] sm:$0xf]
    %v573 = vld [vmem:[#allocation2 + $0x27c] sm:$0xff]
    %v574 = vld [vmem:[#allocation2 + $0x284] sm:$0xf]
    %v575 = vld [vmem:[#allocation2 + $0x2a8] sm:$0xff]
    %v576 = vld [vmem:[#allocation2 + $0x2b0] sm:$0xf]
    %v577 = vld [vmem:[%s3 + $0x5] sm:$0x7]
    %v579 = vlaneseq
    %v580 = vshrl.u32 %v579, 7
    %v581 = vsub.s32 0, %v580
    %v582 = vrot.slane %v577, %v581
    %v583 = vlaneseq
    %v584 = vshrl.u32 %v583, 7
    %v585 = vsub.s32 1, %v584
    %v586 = vrot.slane %v577, %v585
    %v587 = vlaneseq
    %v588 = vshrl.u32 %v587, 7
    %v589 = vsub.s32 2, %v588
    %v590 = vrot.slane %v577, %v589
    %v626 = vunpack.c.l.b16 %v545
    %v627 = vunpack.c.h.b16 %v545
    %v628 = vunpack.c.l.b16 %v546
    %v629 = vunpack.c.l.b16 %v547
    %v630 = vunpack.c.h.b16 %v547
    %v631 = vunpack.c.l.b16 %v548
    %v632 = vunpack.c.l.b16 %v549
    %v633 = vunpack.c.h.b16 %v549
    %v634 = vunpack.c.l.b16 %v550
    %v635 = vunpack.c.l.b16 %v551
    %v636 = vunpack.c.h.b16 %v551
    %v637 = vunpack.c.l.b16 %v552
    %v638 = vunpack.c.l.b16 %v553
    %v639 = vunpack.c.h.b16 %v553
    %v640 = vunpack.c.l.b16 %v554
    %v641 = vunpack.c.l.b16 %v555
    %v642 = vunpack.c.h.b16 %v555
    %v643 = vunpack.c.l.b16 %v556
    %v644 = vunpack.c.l.b16 %v557
    %v645 = vunpack.c.h.b16 %v557
    %v646 = vunpack.c.l.b16 %v558
    %v647 = vunpack.c.l.b16 %v559
    %v648 = vunpack.c.h.b16 %v559
    %v649 = vunpack.c.l.b16 %v560
    %v650 = vunpack.c.l.b16 %v561
    %v651 = vunpack.c.h.b16 %v561
    %v652 = vunpack.c.l.b16 %v562
    %v653 = vunpack.c.l.b16 %v563
    %v654 = vunpack.c.h.b16 %v563
    %v655 = vunpack.c.l.b16 %v564
    %v656 = vunpack.c.l.b16 %v565
    %v657 = vunpack.c.h.b16 %v565
    %v658 = vunpack.c.l.b16 %v566
    %v659 = vunpack.c.l.b16 %v567
    %v660 = vunpack.c.h.b16 %v567
    %v661 = vunpack.c.l.b16 %v568
    %v662 = vunpack.c.l.b16 %v569
    %v663 = vunpack.c.h.b16 %v569
    %v664 = vunpack.c.l.b16 %v570
    %v665 = vunpack.c.l.b16 %v571
    %v666 = vunpack.c.h.b16 %v571
    %v667 = vunpack.c.l.b16 %v572
    %v668 = vunpack.c.l.b16 %v573
    %v669 = vunpack.c.h.b16 %v573
    %v670 = vunpack.c.l.b16 %v574
    %v671 = vunpack.c.l.b16 %v575
    %v672 = vunpack.c.h.b16 %v575
    %v673 = vunpack.c.l.b16 %v576
    %v674 = vpack.c.b16 %v629, %v626
    %v675 = vpack.c.b16 %v630, %v627
    %v676 = vpack.c.b16 %v631, %v628
    %v677 = vpack.c.b16 %v635, %v632
    %v678 = vpack.c.b16 %v636, %v633
    %v679 = vpack.c.b16 %v637, %v634
    %v680 = vpack.c.b16 %v641, %v638
    %v681 = vpack.c.b16 %v642, %v639
    %v682 = vpack.c.b16 %v643, %v640
    %v683 = vpack.c.b16 %v647, %v644
    %v684 = vpack.c.b16 %v648, %v645
    %v685 = vpack.c.b16 %v649, %v646
    %v686 = vpack.c.b16 %v653, %v650
    %v687 = vpack.c.b16 %v654, %v651
    %v688 = vpack.c.b16 %v655, %v652
    %v689 = vpack.c.b16 %v659, %v656
    %v690 = vpack.c.b16 %v660, %v657
    %v691 = vpack.c.b16 %v661, %v658
    %v692 = vpack.c.b16 %v665, %v662
    %v693 = vpack.c.b16 %v666, %v663
    %v694 = vpack.c.b16 %v667, %v664
    %v695 = vpack.c.b16 %v671, %v668
    %v696 = vpack.c.b16 %v672, %v669
    %v697 = vpack.c.b16 %v673, %v670
    %722 = vmatprep.subr.bf16.mxu0 %v675
    %723 = vmatpush1.bf16.msra.mxu0 %v674
    %724 = vmatprep.subr.bf16.mxu0 %v678
    %725 = vmatpush1.bf16.msra.mxu0 %v677
    %726 = vmatprep.subr.bf16.mxu0 %v681
    %727 = vmatpush1.bf16.msra.mxu0 %v680
    %728 = vmatprep.subr.bf16.mxu0 %v684
    %729 = vmatpush1.bf16.msra.mxu0 %v683
    %730 = vmatprep.subr.bf16.mxu0 %v687
    %731 = vmatpush1.bf16.msra.mxu0 %v686
    %732 = vmatprep.subr.bf16.mxu0 %v690
    %733 = vmatpush1.bf16.msra.mxu0 %v689
    %734 = vmatprep.subr.bf16.mxu0 %v693
    %735 = vmatpush1.bf16.msra.mxu0 %v692
    %736 = vmatprep.subr.bf16.mxu0 %v696
    %737 = vmatpush1.bf16.msra.mxu0 %v695
    %738 = vmatprep.subr.bf16.mxu0 0
    %739 = vmatpush1.bf16.msra.mxu0 0
    %740 = vmatprep.subr.bf16.mxu0 0
    %741 = vmatpush1.bf16.msra.mxu0 0
    %742 = vmatprep.subr.bf16.mxu0 0
    %743 = vmatpush1.bf16.msra.mxu0 0
    %744 = vmatprep.subr.bf16.mxu0 0
    %745 = vmatpush1.bf16.msra.mxu0 0
    %746 = vmatprep.subr.bf16.mxu0 0
    %747 = vmatpush1.bf16.msra.mxu0 0
    %748 = vmatprep.subr.bf16.mxu0 0
    %749 = vmatpush1.bf16.msra.mxu0 0
    %750 = vmatprep.subr.bf16.mxu0 0
    %751 = vmatpush1.bf16.msra.mxu0 0
    %752 = vmatprep.subr.bf16.mxu0 0
    %753 = vmatpush1.bf16.msra.mxu0 0
    %754 = vmatprep.mubr.bf16.mxu0 0
    %755 = vmatmul.mubr.bf16.gmra.mrb[0].mxu0 0
    %v756 = vpop.f32.mrb[0].mxu0
    %v757 = vadd.f32 %v582, %v756
    %v758 = vpop.f32.mrb[0].mxu0
    %v759 = vadd.f32 %v586, %v758
    %v760 = vpop.f32.mrb[0].mxu0
    %v761 = vpop.f32.mrb[0].mxu0
    %762 = vdwg.mxu0
    %763 = vmatprep.subr.bf16.mxu0 0
    %764 = vmatpush1.bf16.msra.mxu0 %v676
    %765 = vmatprep.subr.bf16.mxu0 0
    %766 = vmatpush1.bf16.msra.mxu0 %v679
    %767 = vmatprep.subr.bf16.mxu0 0
    %768 = vmatpush1.bf16.msra.mxu0 %v682
    %769 = vmatprep.subr.bf16.mxu0 0
    %770 = vmatpush1.bf16.msra.mxu0 %v685
    %771 = vmatprep.subr.bf16.mxu0 0
    %772 = vmatpush1.bf16.msra.mxu0 %v688
    %773 = vmatprep.subr.bf16.mxu0 0
    %774 = vmatpush1.bf16.msra.mxu0 %v691
    %775 = vmatprep.subr.bf16.mxu0 0
    %776 = vmatpush1.bf16.msra.mxu0 %v694
    %777 = vmatprep.subr.bf16.mxu0 0
    %778 = vmatpush1.bf16.msra.mxu0 %v697
    %779 = vmatprep.subr.bf16.mxu0 0
    %780 = vmatpush1.bf16.msra.mxu0 0
    %781 = vmatprep.subr.bf16.mxu0 0
    %782 = vmatpush1.bf16.msra.mxu0 0
    %783 = vmatprep.subr.bf16.mxu0 0
    %784 = vmatpush1.bf16.msra.mxu0 0
    %785 = vmatprep.subr.bf16.mxu0 0
    %786 = vmatpush1.bf16.msra.mxu0 0
    %787 = vmatprep.subr.bf16.mxu0 0
    %788 = vmatpush1.bf16.msra.mxu0 0
    %789 = vmatprep.subr.bf16.mxu0 0
    %790 = vmatpush1.bf16.msra.mxu0 0
    %791 = vmatprep.subr.bf16.mxu0 0
    %792 = vmatpush1.bf16.msra.mxu0 0
    %793 = vmatprep.subr.bf16.mxu0 0
    %794 = vmatpush1.bf16.msra.mxu0 0
    %795 = vmatprep.mubr.bf16.mxu0 0
    %796 = vmatmul.mubr.bf16.gmra.mrb[0].mxu0 0
    %v797 = vpop.f32.mrb[0].mxu0
    %v798 = vadd.f32 %v590, %v797
    %v799 = vpop.f32.mrb[0].mxu0
    %v800 = vpop.f32.mrb[0].mxu0
    %v801 = vpop.f32.mrb[0].mxu0
    %802 = vdwg.mxu0
    %v803 = vadd.f32 %v496, %v757
    %v804 = vxor.u32 %v803, 2147483648
    %v805 = vmul.f32 %v804, 1.442695
    %v806 = vpow.pop %v805
    %v807 = vadd.f32 %v806, 1.0
    %v808 = vrcp.pop %v807
    %v809 = vmul.f32 1.0, %v808
    %v810 = vadd.f32 %v498, %v759
    %v811 = vxor.u32 %v810, 2147483648
    %v812 = vmul.f32 %v811, 1.442695
    %v813 = vpow.pop %v812
    %v814 = vadd.f32 %v813, 1.0
    %v815 = vrcp.pop %v814
    %v816 = vmul.f32 1.0, %v815
    %v817 = vmul.f32 %v809, %v798
    %v818 = vadd.f32 %v539, %v817
    %v819 = vtanh.pop %v818
    %v820 = vsub.f32 1.0, %v816
    %v821 = vmul.f32 %v820, %v819
    %v822 = vmul.f32 %v816, 0.0
    %v823 = vadd.f32 %v821, %v822
    %v824 = vpack.c.bf16 %v823, %v823
    %825 = vmatprep.subr.bf16.mxu0 %v675
    %826 = vmatpush1.bf16.msra.mxu0 %v674
    %827 = vmatprep.subr.bf16.mxu0 %v678
    %828 = vmatpush1.bf16.msra.mxu0 %v677
    %829 = vmatprep.subr.bf16.mxu0 %v681
    %830 = vmatpush1.bf16.msra.mxu0 %v680
    %831 = vmatprep.subr.bf16.mxu0 %v684
    %832 = vmatpush1.bf16.msra.mxu0 %v683
    %833 = vmatprep.subr.bf16.mxu0 %v687
    %834 = vmatpush1.bf16.msra.mxu0 %v686
    %835 = vmatprep.subr.bf16.mxu0 %v690
    %836 = vmatpush1.bf16.msra.mxu0 %v689
    %837 = vmatprep.subr.bf16.mxu0 %v693
    %838 = vmatpush1.bf16.msra.mxu0 %v692
    %839 = vmatprep.subr.bf16.mxu0 %v696
    %840 = vmatpush1.bf16.msra.mxu0 %v695
    %841 = vmatprep.subr.bf16.mxu0 0
    %842 = vmatpush1.bf16.msra.mxu0 0
    %843 = vmatprep.subr.bf16.mxu0 0
    %844 = vmatpush1.bf16.msra.mxu0 0
    %845 = vmatprep.subr.bf16.mxu0 0
    %846 = vmatpush1.bf16.msra.mxu0 0
    %847 = vmatprep.subr.bf16.mxu0 0
    %848 = vmatpush1.bf16.msra.mxu0 0
    %849 = vmatprep.subr.bf16.mxu0 0
    %850 = vmatpush1.bf16.msra.mxu0 0
    %851 = vmatprep.subr.bf16.mxu0 0
    %852 = vmatpush1.bf16.msra.mxu0 0
    %853 = vmatprep.subr.bf16.mxu0 0
    %854 = vmatpush1.bf16.msra.mxu0 0
    %855 = vmatprep.subr.bf16.mxu0 0
    %856 = vmatpush1.bf16.msra.mxu0 0
    %857 = vmatprep.mubr.bf16.mxu0 0
    %858 = vmatmul.mubr.bf16.gmra.mrb[0].mxu0 %v824
    %v859 = vpop.f32.mrb[0].mxu0
    %v860 = vadd.f32 %v582, %v859
    %v861 = vpop.f32.mrb[0].mxu0
    %v862 = vadd.f32 %v586, %v861
    %v863 = vpop.f32.mrb[0].mxu0
    %v864 = vpop.f32.mrb[0].mxu0
    %865 = vdwg.mxu0
    %866 = vmatprep.subr.bf16.mxu0 0
    %867 = vmatpush1.bf16.msra.mxu0 %v676
    %868 = vmatprep.subr.bf16.mxu0 0
    %869 = vmatpush1.bf16.msra.mxu0 %v679
    %870 = vmatprep.subr.bf16.mxu0 0
    %871 = vmatpush1.bf16.msra.mxu0 %v682
    %872 = vmatprep.subr.bf16.mxu0 0
    %873 = vmatpush1.bf16.msra.mxu0 %v685
    %874 = vmatprep.subr.bf16.mxu0 0
    %875 = vmatpush1.bf16.msra.mxu0 %v688
    %876 = vmatprep.subr.bf16.mxu0 0
    %877 = vmatpush1.bf16.msra.mxu0 %v691
    %878 = vmatprep.subr.bf16.mxu0 0
    %879 = vmatpush1.bf16.msra.mxu0 %v694
    %880 = vmatprep.subr.bf16.mxu0 0
    %881 = vmatpush1.bf16.msra.mxu0 %v697
    %882 = vmatprep.subr.bf16.mxu0 0
    %883 = vmatpush1.bf16.msra.mxu0 0
    %884 = vmatprep.subr.bf16.mxu0 0
    %885 = vmatpush1.bf16.msra.mxu0 0
    %886 = vmatprep.subr.bf16.mxu0 0
    %887 = vmatpush1.bf16.msra.mxu0 0
    %888 = vmatprep.subr.bf16.mxu0 0
    %889 = vmatpush1.bf16.msra.mxu0 0
    %890 = vmatprep.subr.bf16.mxu0 0
    %891 = vmatpush1.bf16.msra.mxu0 0
    %892 = vmatprep.subr.bf16.mxu0 0
    %893 = vmatpush1.bf16.msra.mxu0 0
    %894 = vmatprep.subr.bf16.mxu0 0
    %895 = vmatpush1.bf16.msra.mxu0 0
    %896 = vmatprep.subr.bf16.mxu0 0
    %897 = vmatpush1.bf16.msra.mxu0 0
    %898 = vmatprep.mubr.bf16.mxu0 0
    %899 = vmatmul.mubr.bf16.gmra.mrb[0].mxu0 %v824
    %v900 = vpop.f32.mrb[0].mxu0
    %v901 = vadd.f32 %v590, %v900
    %v902 = vpop.f32.mrb[0].mxu0
    %v903 = vpop.f32.mrb[0].mxu0
    %v904 = vpop.f32.mrb[0].mxu0
    %905 = vdwg.mxu0
    %v907 = vrot.slane %v860, 6
    %v909 = vadd.f32 %v496, %v907
    %v910 = vxor.u32 %v909, 2147483648
    %v911 = vmul.f32 %v910, 1.442695
    %v912 = vpow.pop %v911
    %v913 = vadd.f32 %v912, 1.0
    %v914 = vrcp.pop %v913
    %v915 = vmul.f32 1.0, %v914
    %v917 = vrot.slane %v862, 6
    %v919 = vadd.f32 %v498, %v917
    %v920 = vxor.u32 %v919, 2147483648
    %v921 = vmul.f32 %v920, 1.442695
    %v922 = vpow.pop %v921
    %v923 = vadd.f32 %v922, 1.0
    %v924 = vrcp.pop %v923
    %v925 = vmul.f32 1.0, %v924
    %v927 = vrot.slane %v901, 6
    %v929 = vmul.f32 %v915, %v927
    %v930 = vadd.f32 %v539, %v929
    %v931 = vtanh.pop %v930
    %v932 = vsub.f32 1.0, %v925
    %v933 = vmul.f32 %v932, %v931
    %v935 = vrot.slane %v823, 6
    %v937 = vmul.f32 %v925, %v935
    %v938 = vadd.f32 %v933, %v937
    %v939 = vpack.c.bf16 %v938, %v938
    %v941 = vrot.slane %v939, 1
    %943 = vmatprep.subr.bf16.mxu0 %v675
    %944 = vmatpush1.bf16.msra.mxu0 %v674
    %945 = vmatprep.subr.bf16.mxu0 %v678
    %946 = vmatpush1.bf16.msra.mxu0 %v677
    %947 = vmatprep.subr.bf16.mxu0 %v681
    %948 = vmatpush1.bf16.msra.mxu0 %v680
    %949 = vmatprep.subr.bf16.mxu0 %v684
    %950 = vmatpush1.bf16.msra.mxu0 %v683
    %951 = vmatprep.subr.bf16.mxu0 %v687
    %952 = vmatpush1.bf16.msra.mxu0 %v686
    %953 = vmatprep.subr.bf16.mxu0 %v690
    %954 = vmatpush1.bf16.msra.mxu0 %v689
    %955 = vmatprep.subr.bf16.mxu0 %v693
    %956 = vmatpush1.bf16.msra.mxu0 %v692
    %957 = vmatprep.subr.bf16.mxu0 %v696
    %958 = vmatpush1.bf16.msra.mxu0 %v695
    %959 = vmatprep.subr.bf16.mxu0 0
    %960 = vmatpush1.bf16.msra.mxu0 0
    %961 = vmatprep.subr.bf16.mxu0 0
    %962 = vmatpush1.bf16.msra.mxu0 0
    %963 = vmatprep.subr.bf16.mxu0 0
    %964 = vmatpush1.bf16.msra.mxu0 0
    %965 = vmatprep.subr.bf16.mxu0 0
    %966 = vmatpush1.bf16.msra.mxu0 0
    %967 = vmatprep.subr.bf16.mxu0 0
    %968 = vmatpush1.bf16.msra.mxu0 0
    %969 = vmatprep.subr.bf16.mxu0 0
    %970 = vmatpush1.bf16.msra.mxu0 0
    %971 = vmatprep.subr.bf16.mxu0 0
    %972 = vmatpush1.bf16.msra.mxu0 0
    %973 = vmatprep.subr.bf16.mxu0 0
    %974 = vmatpush1.bf16.msra.mxu0 0
    %975 = vmatprep.mubr.bf16.mxu0 0
    %976 = vmatmul.mubr.bf16.gmra.mrb[0].mxu0 %v941
    %v977 = vpop.f32.mrb[0].mxu0
    %v978 = vadd.f32 %v582, %v977
    %v979 = vpop.f32.mrb[0].mxu0
    %v980 = vadd.f32 %v586, %v979
    %v981 = vpop.f32.mrb[0].mxu0
    %v982 = vpop.f32.mrb[0].mxu0
    %983 = vdwg.mxu0
    %984 = vmatprep.subr.bf16.mxu0 0
    %985 = vmatpush1.bf16.msra.mxu0 %v676
    %986 = vmatprep.subr.bf16.mxu0 0
    %987 = vmatpush1.bf16.msra.mxu0 %v679
    %988 = vmatprep.subr.bf16.mxu0 0
    %989 = vmatpush1.bf16.msra.mxu0 %v682
    %990 = vmatprep.subr.bf16.mxu0 0
    %991 = vmatpush1.bf16.msra.mxu0 %v685
    %992 = vmatprep.subr.bf16.mxu0 0
    %993 = vmatpush1.bf16.msra.mxu0 %v688
    %994 = vmatprep.subr.bf16.mxu0 0
    %995 = vmatpush1.bf16.msra.mxu0 %v691
    %996 = vmatprep.subr.bf16.mxu0 0
    %997 = vmatpush1.bf16.msra.mxu0 %v694
    %998 = vmatprep.subr.bf16.mxu0 0
    %999 = vmatpush1.bf16.msra.mxu0 %v697
    %1000 = vmatprep.subr.bf16.mxu0 0
    %1001 = vmatpush1.bf16.msra.mxu0 0
    %1002 = vmatprep.subr.bf16.mxu0 0
    %1003 = vmatpush1.bf16.msra.mxu0 0
    %1004 = vmatprep.subr.bf16.mxu0 0
    %1005 = vmatpush1.bf16.msra.mxu0 0
    %1006 = vmatprep.subr.bf16.mxu0 0
    %1007 = vmatpush1.bf16.msra.mxu0 0
    %1008 = vmatprep.subr.bf16.mxu0 0
    %1009 = vmatpush1.bf16.msra.mxu0 0
    %1010 = vmatprep.subr.bf16.mxu0 0
    %1011 = vmatpush1.bf16.msra.mxu0 0
    %1012 = vmatprep.subr.bf16.mxu0 0
    %1013 = vmatpush1.bf16.msra.mxu0 0
    %1014 = vmatprep.subr.bf16.mxu0 0
    %1015 = vmatpush1.bf16.msra.mxu0 0
    %1016 = vmatprep.mubr.bf16.mxu0 0
    %1017 = vmatmul.mubr.bf16.gmra.mrb[0].mxu0 %v941
    %v1018 = vpop.f32.mrb[0].mxu0
    %v1019 = vadd.f32 %v590, %v1018
    %v1020 = vpop.f32.mrb[0].mxu0
    %v1021 = vpop.f32.mrb[0].mxu0
    %v1022 = vpop.f32.mrb[0].mxu0
    %1023 = vdwg.mxu0
    %v1025 = vrot.slane %v978, 4
    %v1027 = vadd.f32 %v496, %v1025
    %v1028 = vxor.u32 %v1027, 2147483648
    %v1029 = vmul.f32 %v1028, 1.442695
    %v1030 = vpow.pop %v1029
    %v1031 = vadd.f32 %v1030, 1.0
    %v1032 = vrcp.pop %v1031
    %v1033 = vmul.f32 1.0, %v1032
    %v1035 = vrot.slane %v980, 4
    %v1037 = vadd.f32 %v498, %v1035
    %v1038 = vxor.u32 %v1037, 2147483648
    %v1039 = vmul.f32 %v1038, 1.442695
    %v1040 = vpow.pop %v1039
    %v1041 = vadd.f32 %v1040, 1.0
    %v1042 = vrcp.pop %v1041
    %v1043 = vmul.f32 1.0, %v1042
    %v1045 = vrot.slane %v1019, 4
    %v1047 = vmul.f32 %v1033, %v1045
    %v1048 = vadd.f32 %v539, %v1047
    %v1049 = vtanh.pop %v1048
    %v1050 = vsub.f32 1.0, %v1043
    %v1051 = vmul.f32 %v1050, %v1049
    %v1053 = vrot.slane %v938, 6
    %v1055 = vmul.f32 %v1043, %v1053
    %v1056 = vadd.f32 %v1051, %v1055
    %v1057 = vpack.c.bf16 %v1056, %v1056
    %v1059 = vrot.slane %v1057, 2
    %1061 = vmatprep.subr.bf16.mxu0 %v675
    %1062 = vmatpush1.bf16.msra.mxu0 %v674
    %1063 = vmatprep.subr.bf16.mxu0 %v678
    %1064 = vmatpush1.bf16.msra.mxu0 %v677
    %1065 = vmatprep.subr.bf16.mxu0 %v681
    %1066 = vmatpush1.bf16.msra.mxu0 %v680
    %1067 = vmatprep.subr.bf16.mxu0 %v684
    %1068 = vmatpush1.bf16.msra.mxu0 %v683
    %1069 = vmatprep.subr.bf16.mxu0 %v687
    %1070 = vmatpush1.bf16.msra.mxu0 %v686
    %1071 = vmatprep.subr.bf16.mxu0 %v690
    %1072 = vmatpush1.bf16.msra.mxu0 %v689
    %1073 = vmatprep.subr.bf16.mxu0 %v693
    %1074 = vmatpush1.bf16.msra.mxu0 %v692
    %1075 = vmatprep.subr.bf16.mxu0 %v696
    %1076 = vmatpush1.bf16.msra.mxu0 %v695
    %1077 = vmatprep.subr.bf16.mxu0 0
    %1078 = vmatpush1.bf16.msra.mxu0 0
    %1079 = vmatprep.subr.bf16.mxu0 0
    %1080 = vmatpush1.bf16.msra.mxu0 0
    %1081 = vmatprep.subr.bf16.mxu0 0
    %1082 = vmatpush1.bf16.msra.mxu0 0
    %1083 = vmatprep.subr.bf16.mxu0 0
    %1084 = vmatpush1.bf16.msra.mxu0 0
    %1085 = vmatprep.subr.bf16.mxu0 0
    %1086 = vmatpush1.bf16.msra.mxu0 0
    %1087 = vmatprep.subr.bf16.mxu0 0
    %1088 = vmatpush1.bf16.msra.mxu0 0
    %1089 = vmatprep.subr.bf16.mxu0 0
    %1090 = vmatpush1.bf16.msra.mxu0 0
    %1091 = vmatprep.subr.bf16.mxu0 0
    %1092 = vmatpush1.bf16.msra.mxu0 0
    %1093 = vmatprep.mubr.bf16.mxu0 0
    %1094 = vmatmul.mubr.bf16.gmra.mrb[0].mxu0 %v1059
    %v1095 = vpop.f32.mrb[0].mxu0
    %v1096 = vadd.f32 %v582, %v1095
    %v1097 = vpop.f32.mrb[0].mxu0
    %v1098 = vadd.f32 %v586, %v1097
    %v1099 = vpop.f32.mrb[0].mxu0
    %v1100 = vpop.f32.mrb[0].mxu0
    %1101 = vdwg.mxu0
    %1102 = vmatprep.subr.bf16.mxu0 0
    %1103 = vmatpush1.bf16.msra.mxu0 %v676
    %1104 = vmatprep.subr.bf16.mxu0 0
    %1105 = vmatpush1.bf16.msra.mxu0 %v679
    %1106 = vmatprep.subr.bf16.mxu0 0
    %1107 = vmatpush1.bf16.msra.mxu0 %v682
    %1108 = vmatprep.subr.bf16.mxu0 0
    %1109 = vmatpush1.bf16.msra.mxu0 %v685
    %1110 = vmatprep.subr.bf16.mxu0 0
    %1111 = vmatpush1.bf16.msra.mxu0 %v688
    %1112 = vmatprep.subr.bf16.mxu0 0
    %1113 = vmatpush1.bf16.msra.mxu0 %v691
    %1114 = vmatprep.subr.bf16.mxu0 0
    %1115 = vmatpush1.bf16.msra.mxu0 %v694
    %1116 = vmatprep.subr.bf16.mxu0 0
    %1117 = vmatpush1.bf16.msra.mxu0 %v697
    %1118 = vmatprep.subr.bf16.mxu0 0
    %1119 = vmatpush1.bf16.msra.mxu0 0
    %1120 = vmatprep.subr.bf16.mxu0 0
    %1121 = vmatpush1.bf16.msra.mxu0 0
    %1122 = vmatprep.subr.bf16.mxu0 0
    %1123 = vmatpush1.bf16.msra.mxu0 0
    %1124 = vmatprep.subr.bf16.mxu0 0
    %1125 = vmatpush1.bf16.msra.mxu0 0
    %1126 = vmatprep.subr.bf16.mxu0 0
    %1127 = vmatpush1.bf16.msra.mxu0 0
    %1128 = vmatprep.subr.bf16.mxu0 0
    %1129 = vmatpush1.bf16.msra.mxu0 0
    %1130 = vmatprep.subr.bf16.mxu0 0
    %1131 = vmatpush1.bf16.msra.mxu0 0
    %1132 = vmatprep.subr.bf16.mxu0 0
    %1133 = vmatpush1.bf16.msra.mxu0 0
    %1134 = vmatprep.mubr.bf16.mxu0 0
    %1135 = vmatmul.mubr.bf16.gmra.mrb[0].mxu0 %v1059
    %v1136 = vpop.f32.mrb[0].mxu0
    %v1137 = vadd.f32 %v590, %v1136
    %v1138 = vpop.f32.mrb[0].mxu0
    %v1139 = vpop.f32.mrb[0].mxu0
    %v1140 = vpop.f32.mrb[0].mxu0
    %1141 = vdwg.mxu0
    %v1143 = vrot.slane %v1096, 2
    %v1145 = vadd.f32 %v496, %v1143
    %v1146 = vxor.u32 %v1145, 2147483648
    %v1147 = vmul.f32 %v1146, 1.442695
    %v1148 = vpow.pop %v1147
    %v1149 = vadd.f32 %v1148, 1.0
    %v1150 = vrcp.pop %v1149
    %v1151 = vmul.f32 1.0, %v1150
    %v1153 = vrot.slane %v1098, 2
    %v1155 = vadd.f32 %v498, %v1153
    %v1156 = vxor.u32 %v1155, 2147483648
    %v1157 = vmul.f32 %v1156, 1.442695
    %v1158 = vpow.pop %v1157
    %v1159 = vadd.f32 %v1158, 1.0
    %v1160 = vrcp.pop %v1159
    %v1161 = vmul.f32 1.0, %v1160
    %v1163 = vrot.slane %v1137, 2
    %v1165 = vmul.f32 %v1151, %v1163
    %v1166 = vadd.f32 %v539, %v1165
    %v1167 = vtanh.pop %v1166
    %v1168 = vsub.f32 1.0, %v1161
    %v1169 = vmul.f32 %v1168, %v1167
    %v1171 = vrot.slane %v1056, 6
    %v1173 = vmul.f32 %v1161, %v1171
    %v1174 = vadd.f32 %v1169, %v1173
    %v1175 = vpack.c.bf16 %v1174, %v1174
    %v1177 = vrot.slane %v1175, 3
    %1179 = vmatprep.subr.bf16.mxu0 %v675
    %1180 = vmatpush1.bf16.msra.mxu0 %v674
    %1181 = vmatprep.subr.bf16.mxu0 %v678
    %1182 = vmatpush1.bf16.msra.mxu0 %v677
    %1183 = vmatprep.subr.bf16.mxu0 %v681
    %1184 = vmatpush1.bf16.msra.mxu0 %v680
    %1185 = vmatprep.subr.bf16.mxu0 %v684
    %1186 = vmatpush1.bf16.msra.mxu0 %v683
    %1187 = vmatprep.subr.bf16.mxu0 %v687
    %1188 = vmatpush1.bf16.msra.mxu0 %v686
    %1189 = vmatprep.subr.bf16.mxu0 %v690
    %1190 = vmatpush1.bf16.msra.mxu0 %v689
    %1191 = vmatprep.subr.bf16.mxu0 %v693
    %1192 = vmatpush1.bf16.msra.mxu0 %v692
    %1193 = vmatprep.subr.bf16.mxu0 %v696
    %1194 = vmatpush1.bf16.msra.mxu0 %v695
    %1195 = vmatprep.subr.bf16.mxu0 0
    %1196 = vmatpush1.bf16.msra.mxu0 0
    %1197 = vmatprep.subr.bf16.mxu0 0
    %1198 = vmatpush1.bf16.msra.mxu0 0
    %1199 = vmatprep.subr.bf16.mxu0 0
    %1200 = vmatpush1.bf16.msra.mxu0 0
    %1201 = vmatprep.subr.bf16.mxu0 0
    %1202 = vmatpush1.bf16.msra.mxu0 0
    %1203 = vmatprep.subr.bf16.mxu0 0
    %1204 = vmatpush1.bf16.msra.mxu0 0
    %1205 = vmatprep.subr.bf16.mxu0 0
    %1206 = vmatpush1.bf16.msra.mxu0 0
    %1207 = vmatprep.subr.bf16.mxu0 0
    %1208 = vmatpush1.bf16.msra.mxu0 0
    %1209 = vmatprep.subr.bf16.mxu0 0
    %1210 = vmatpush1.bf16.msra.mxu0 0
    %1211 = vmatprep.mubr.bf16.mxu0 0
    %1212 = vmatmul.mubr.bf16.gmra.mrb[0].mxu0 %v1177
    %v1213 = vpop.f32.mrb[0].mxu0
    %v1214 = vadd.f32 %v582, %v1213
    %v1215 = vpop.f32.mrb[0].mxu0
    %v1216 = vadd.f32 %v586, %v1215
    %v1217 = vpop.f32.mrb[0].mxu0
    %v1218 = vpop.f32.mrb[0].mxu0
    %1219 = vdwg.mxu0
    %1220 = vmatprep.subr.bf16.mxu0 0
    %1221 = vmatpush1.bf16.msra.mxu0 %v676
    %1222 = vmatprep.subr.bf16.mxu0 0
    %1223 = vmatpush1.bf16.msra.mxu0 %v679
    %1224 = vmatprep.subr.bf16.mxu0 0
    %1225 = vmatpush1.bf16.msra.mxu0 %v682
    %1226 = vmatprep.subr.bf16.mxu0 0
    %1227 = vmatpush1.bf16.msra.mxu0 %v685
    %1228 = vmatprep.subr.bf16.mxu0 0
    %1229 = vmatpush1.bf16.msra.mxu0 %v688
    %1230 = vmatprep.subr.bf16.mxu0 0
    %1231 = vmatpush1.bf16.msra.mxu0 %v691
    %1232 = vmatprep.subr.bf16.mxu0 0
    %1233 = vmatpush1.bf16.msra.mxu0 %v694
    %1234 = vmatprep.subr.bf16.mxu0 0
    %1235 = vmatpush1.bf16.msra.mxu0 %v697
    %1236 = vmatprep.subr.bf16.mxu0 0
    %1237 = vmatpush1.bf16.msra.mxu0 0
    %1238 = vmatprep.subr.bf16.mxu0 0
    %1239 = vmatpush1.bf16.msra.mxu0 0
    %1240 = vmatprep.subr.bf16.mxu0 0
    %1241 = vmatpush1.bf16.msra.mxu0 0
    %1242 = vmatprep.subr.bf16.mxu0 0
    %1243 = vmatpush1.bf16.msra.mxu0 0
    %1244 = vmatprep.subr.bf16.mxu0 0
    %1245 = vmatpush1.bf16.msra.mxu0 0
    %1246 = vmatprep.subr.bf16.mxu0 0
    %1247 = vmatpush1.bf16.msra.mxu0 0
    %1248 = vmatprep.subr.bf16.mxu0 0
    %1249 = vmatpush1.bf16.msra.mxu0 0
    %1250 = vmatprep.subr.bf16.mxu0 0
    %1251 = vmatpush1.bf16.msra.mxu0 0
    %1252 = vmatprep.mubr.bf16.mxu0 0
    %1253 = vmatmul.mubr.bf16.gmra.mrb[0].mxu0 %v1177
    %v1254 = vpop.f32.mrb[0].mxu0
    %v1255 = vadd.f32 %v590, %v1254
    %v1256 = vpop.f32.mrb[0].mxu0
    %v1257 = vpop.f32.mrb[0].mxu0
    %v1258 = vpop.f32.mrb[0].mxu0
    %1259 = vdwg.mxu0
    %v1260 = vadd.f32 %v500, %v1214
    %v1261 = vxor.u32 %v1260, 2147483648
    %v1262 = vmul.f32 %v1261, 1.442695
    %v1263 = vpow.pop %v1262
    %v1264 = vadd.f32 %v1263, 1.0
    %v1265 = vrcp.pop %v1264
    %v1266 = vmul.f32 1.0, %v1265
    %v1267 = vadd.f32 %v502, %v1216
    %v1268 = vxor.u32 %v1267, 2147483648
    %v1269 = vmul.f32 %v1268, 1.442695
    %v1270 = vpow.pop %v1269
    %v1271 = vadd.f32 %v1270, 1.0
    %v1272 = vrcp.pop %v1271
    %v1273 = vmul.f32 1.0, %v1272
    %v1274 = vmul.f32 %v1266, %v1255
    %v1275 = vadd.f32 %v542, %v1274
    %v1276 = vtanh.pop %v1275
    %v1277 = vsub.f32 1.0, %v1273
    %v1278 = vmul.f32 %v1277, %v1276
    %v1280 = vrot.slane %v1174, 6
    %v1282 = vmul.f32 %v1273, %v1280
    %v1283 = vadd.f32 %v1278, %v1282
    %v1284 = vpack.c.bf16 %v1283, %v1283
    %1285 = vmatprep.subr.bf16.mxu0 %v675
    %1286 = vmatpush1.bf16.msra.mxu0 %v674
    %1287 = vmatprep.subr.bf16.mxu0 %v678
    %1288 = vmatpush1.bf16.msra.mxu0 %v677
    %1289 = vmatprep.subr.bf16.mxu0 %v681
    %1290 = vmatpush1.bf16.msra.mxu0 %v680
    %1291 = vmatprep.subr.bf16.mxu0 %v684
    %1292 = vmatpush1.bf16.msra.mxu0 %v683
    %1293 = vmatprep.subr.bf16.mxu0 %v687
    %1294 = vmatpush1.bf16.msra.mxu0 %v686
    %1295 = vmatprep.subr.bf16.mxu0 %v690
    %1296 = vmatpush1.bf16.msra.mxu0 %v689
    %1297 = vmatprep.subr.bf16.mxu0 %v693
    %1298 = vmatpush1.bf16.msra.mxu0 %v692
    %1299 = vmatprep.subr.bf16.mxu0 %v696
    %1300 = vmatpush1.bf16.msra.mxu0 %v695
    %1301 = vmatprep.subr.bf16.mxu0 0
    %1302 = vmatpush1.bf16.msra.mxu0 0
    %1303 = vmatprep.subr.bf16.mxu0 0
    %1304 = vmatpush1.bf16.msra.mxu0 0
    %1305 = vmatprep.subr.bf16.mxu0 0
    %1306 = vmatpush1.bf16.msra.mxu0 0
    %1307 = vmatprep.subr.bf16.mxu0 0
    %1308 = vmatpush1.bf16.msra.mxu0 0
    %1309 = vmatprep.subr.bf16.mxu0 0
    %1310 = vmatpush1.bf16.msra.mxu0 0
    %1311 = vmatprep.subr.bf16.mxu0 0
    %1312 = vmatpush1.bf16.msra.mxu0 0
    %1313 = vmatprep.subr.bf16.mxu0 0
    %1314 = vmatpush1.bf16.msra.mxu0 0
    %1315 = vmatprep.subr.bf16.mxu0 0
    %1316 = vmatpush1.bf16.msra.mxu0 0
    %1317 = vmatprep.mubr.bf16.mxu0 0
    %1318 = vmatmul.mubr.bf16.gmra.mrb[0].mxu0 %v1284
    %v1319 = vpop.f32.mrb[0].mxu0
    %v1320 = vadd.f32 %v582, %v1319
    %v1321 = vpop.f32.mrb[0].mxu0
    %v1322 = vadd.f32 %v586, %v1321
    %v1323 = vpop.f32.mrb[0].mxu0
    %v1324 = vpop.f32.mrb[0].mxu0
    %1325 = vdwg.mxu0
    %1326 = vmatprep.subr.bf16.mxu0 0
    %1327 = vmatpush1.bf16.msra.mxu0 %v676
    %1328 = vmatprep.subr.bf16.mxu0 0
    %1329 = vmatpush1.bf16.msra.mxu0 %v679
    %1330 = vmatprep.subr.bf16.mxu0 0
    %1331 = vmatpush1.bf16.msra.mxu0 %v682
    %1332 = vmatprep.subr.bf16.mxu0 0
    %1333 = vmatpush1.bf16.msra.mxu0 %v685
    %1334 = vmatprep.subr.bf16.mxu0 0
    %1335 = vmatpush1.bf16.msra.mxu0 %v688
    %1336 = vmatprep.subr.bf16.mxu0 0
    %1337 = vmatpush1.bf16.msra.mxu0 %v691
    %1338 = vmatprep.subr.bf16.mxu0 0
    %1339 = vmatpush1.bf16.msra.mxu0 %v694
    %1340 = vmatprep.subr.bf16.mxu0 0
    %1341 = vmatpush1.bf16.msra.mxu0 %v697
    %1342 = vmatprep.subr.bf16.mxu0 0
    %1343 = vmatpush1.bf16.msra.mxu0 0
    %1344 = vmatprep.subr.bf16.mxu0 0
    %1345 = vmatpush1.bf16.msra.mxu0 0
    %1346 = vmatprep.subr.bf16.mxu0 0
    %1347 = vmatpush1.bf16.msra.mxu0 0
    %1348 = vmatprep.subr.bf16.mxu0 0
    %1349 = vmatpush1.bf16.msra.mxu0 0
    %1350 = vmatprep.subr.bf16.mxu0 0
    %1351 = vmatpush1.bf16.msra.mxu0 0
    %1352 = vmatprep.subr.bf16.mxu0 0
    %1353 = vmatpush1.bf16.msra.mxu0 0
    %1354 = vmatprep.subr.bf16.mxu0 0
    %1355 = vmatpush1.bf16.msra.mxu0 0
    %1356 = vmatprep.subr.bf16.mxu0 0
    %1357 = vmatpush1.bf16.msra.mxu0 0
    %1358 = vmatprep.mubr.bf16.mxu0 0
    %1359 = vmatmul.mubr.bf16.gmra.mrb[0].mxu0 %v1284
    %v1360 = vpop.f32.mrb[0].mxu0
    %v1361 = vadd.f32 %v590, %v1360
    %v1362 = vpop.f32.mrb[0].mxu0
    %v1363 = vpop.f32.mrb[0].mxu0
    %v1364 = vpop.f32.mrb[0].mxu0
    %1365 = vdwg.mxu0
    %v1367 = vrot.slane %v1320, 6
    %v1369 = vadd.f32 %v500, %v1367
    %v1370 = vxor.u32 %v1369, 2147483648
    %v1371 = vmul.f32 %v1370, 1.442695
    %v1372 = vpow.pop %v1371
    %v1373 = vadd.f32 %v1372, 1.0
    %v1374 = vrcp.pop %v1373
    %v1375 = vmul.f32 1.0, %v1374
    %v1377 = vrot.slane %v1322, 6
    %v1379 = vadd.f32 %v502, %v1377
    %v1380 = vxor.u32 %v1379, 2147483648
    %v1381 = vmul.f32 %v1380, 1.442695
    %v1382 = vpow.pop %v1381
    %v1383 = vadd.f32 %v1382, 1.0
    %v1384 = vrcp.pop %v1383
    %v1385 = vmul.f32 1.0, %v1384
    %v1387 = vrot.slane %v1361, 6
    %v1389 = vmul.f32 %v1375, %v1387
    %v1390 = vadd.f32 %v542, %v1389
    %v1391 = vtanh.pop %v1390
    %v1392 = vsub.f32 1.0, %v1385
    %v1393 = vmul.f32 %v1392, %v1391
    %v1395 = vrot.slane %v1283, 6
    %v1397 = vmul.f32 %v1385, %v1395
    %v1398 = vadd.f32 %v1393, %v1397
    %v1399 = vpack.c.bf16 %v1398, %v1398
    %v1401 = vrot.slane %v1399, 1
    %1403 = vmatprep.subr.bf16.mxu0 %v675
    %1404 = vmatpush1.bf16.msra.mxu0 %v674
    %1405 = vmatprep.subr.bf16.mxu0 %v678
    %1406 = vmatpush1.bf16.msra.mxu0 %v677
    %1407 = vmatprep.subr.bf16.mxu0 %v681
    %1408 = vmatpush1.bf16.msra.mxu0 %v680
    %1409 = vmatprep.subr.bf16.mxu0 %v684
    %1410 = vmatpush1.bf16.msra.mxu0 %v683
    %1411 = vmatprep.subr.bf16.mxu0 %v687
    %1412 = vmatpush1.bf16.msra.mxu0 %v686
    %1413 = vmatprep.subr.bf16.mxu0 %v690
    %1414 = vmatpush1.bf16.msra.mxu0 %v689
    %1415 = vmatprep.subr.bf16.mxu0 %v693
    %1416 = vmatpush1.bf16.msra.mxu0 %v692
    %1417 = vmatprep.subr.bf16.mxu0 %v696
    %1418 = vmatpush1.bf16.msra.mxu0 %v695
    %1419 = vmatprep.subr.bf16.mxu0 0
    %1420 = vmatpush1.bf16.msra.mxu0 0
    %1421 = vmatprep.subr.bf16.mxu0 0
    %1422 = vmatpush1.bf16.msra.mxu0 0
    %1423 = vmatprep.subr.bf16.mxu0 0
    %1424 = vmatpush1.bf16.msra.mxu0 0
    %1425 = vmatprep.subr.bf16.mxu0 0
    %1426 = vmatpush1.bf16.msra.mxu0 0
    %1427 = vmatprep.subr.bf16.mxu0 0
    %1428 = vmatpush1.bf16.msra.mxu0 0
    %1429 = vmatprep.subr.bf16.mxu0 0
    %1430 = vmatpush1.bf16.msra.mxu0 0
    %1431 = vmatprep.subr.bf16.mxu0 0
    %1432 = vmatpush1.bf16.msra.mxu0 0
    %1433 = vmatprep.subr.bf16.mxu0 0
    %1434 = vmatpush1.bf16.msra.mxu0 0
    %1435 = vmatprep.mubr.bf16.mxu0 0
    %1436 = vmatmul.mubr.bf16.gmra.mrb[0].mxu0 %v1401
    %v1437 = vpop.f32.mrb[0].mxu0
    %v1438 = vadd.f32 %v582, %v1437
    %v1439 = vpop.f32.mrb[0].mxu0
    %v1440 = vadd.f32 %v586, %v1439
    %v1441 = vpop.f32.mrb[0].mxu0
    %v1442 = vpop.f32.mrb[0].mxu0
    %1443 = vdwg.mxu0
    %1444 = vmatprep.subr.bf16.mxu0 0
    %1445 = vmatpush1.bf16.msra.mxu0 %v676
    %1446 = vmatprep.subr.bf16.mxu0 0
    %1447 = vmatpush1.bf16.msra.mxu0 %v679
    %1448 = vmatprep.subr.bf16.mxu0 0
    %1449 = vmatpush1.bf16.msra.mxu0 %v682
    %1450 = vmatprep.subr.bf16.mxu0 0
    %1451 = vmatpush1.bf16.msra.mxu0 %v685
    %1452 = vmatprep.subr.bf16.mxu0 0
    %1453 = vmatpush1.bf16.msra.mxu0 %v688
    %1454 = vmatprep.subr.bf16.mxu0 0
    %1455 = vmatpush1.bf16.msra.mxu0 %v691
    %1456 = vmatprep.subr.bf16.mxu0 0
    %1457 = vmatpush1.bf16.msra.mxu0 %v694
    %1458 = vmatprep.subr.bf16.mxu0 0
    %1459 = vmatpush1.bf16.msra.mxu0 %v697
    %1460 = vmatprep.subr.bf16.mxu0 0
    %1461 = vmatpush1.bf16.msra.mxu0 0
    %1462 = vmatprep.subr.bf16.mxu0 0
    %1463 = vmatpush1.bf16.msra.mxu0 0
    %1464 = vmatprep.subr.bf16.mxu0 0
    %1465 = vmatpush1.bf16.msra.mxu0 0
    %1466 = vmatprep.subr.bf16.mxu0 0
    %1467 = vmatpush1.bf16.msra.mxu0 0
    %1468 = vmatprep.subr.bf16.mxu0 0
    %1469 = vmatpush1.bf16.msra.mxu0 0
    %1470 = vmatprep.subr.bf16.mxu0 0
    %1471 = vmatpush1.bf16.msra.mxu0 0
    %1472 = vmatprep.subr.bf16.mxu0 0
    %1473 = vmatpush1.bf16.msra.mxu0 0
    %1474 = vmatprep.subr.bf16.mxu0 0
    %1475 = vmatpush1.bf16.msra.mxu0 0
    %1476 = vmatprep.mubr.bf16.mxu0 0
    %1477 = vmatmul.mubr.bf16.gmra.mrb[0].mxu0 %v1401
    %v1478 = vpop.f32.mrb[0].mxu0
    %v1479 = vadd.f32 %v590, %v1478
    %v1480 = vpop.f32.mrb[0].mxu0
    %v1481 = vpop.f32.mrb[0].mxu0
    %v1482 = vpop.f32.mrb[0].mxu0
    %1483 = vdwg.mxu0
    %v1485 = vrot.slane %v1438, 4
    %v1487 = vadd.f32 %v500, %v1485
    %v1488 = vxor.u32 %v1487, 2147483648
    %v1489 = vmul.f32 %v1488, 1.442695
    %v1490 = vpow.pop %v1489
    %v1491 = vadd.f32 %v1490, 1.0
    %v1492 = vrcp.pop %v1491
    %v1493 = vmul.f32 1.0, %v1492
    %v1495 = vrot.slane %v1440, 4
    %v1497 = vadd.f32 %v502, %v1495
    %v1498 = vxor.u32 %v1497, 2147483648
    %v1499 = vmul.f32 %v1498, 1.442695
    %v1500 = vpow.pop %v1499
    %v1501 = vadd.f32 %v1500, 1.0
    %v1502 = vrcp.pop %v1501
    %v1503 = vmul.f32 1.0, %v1502
    %v1505 = vrot.slane %v1479, 4
    %v1507 = vmul.f32 %v1493, %v1505
    %v1508 = vadd.f32 %v542, %v1507
    %v1509 = vtanh.pop %v1508
    %v1510 = vsub.f32 1.0, %v1503
    %v1511 = vmul.f32 %v1510, %v1509
    %v1513 = vrot.slane %v1398, 6
    %v1515 = vmul.f32 %v1503, %v1513
    %v1516 = vadd.f32 %v1511, %v1515
    %v1517 = vpack.c.bf16 %v1516, %v1516
    %v1519 = vrot.slane %v1517, 2
    %1521 = vmatprep.subr.bf16.mxu0 %v675
    %1522 = vmatpush1.bf16.msra.mxu0 %v674
    %1523 = vmatprep.subr.bf16.mxu0 %v678
    %1524 = vmatpush1.bf16.msra.mxu0 %v677
    %1525 = vmatprep.subr.bf16.mxu0 %v681
    %1526 = vmatpush1.bf16.msra.mxu0 %v680
    %1527 = vmatprep.subr.bf16.mxu0 %v684
    %1528 = vmatpush1.bf16.msra.mxu0 %v683
    %1529 = vmatprep.subr.bf16.mxu0 %v687
    %1530 = vmatpush1.bf16.msra.mxu0 %v686
    %1531 = vmatprep.subr.bf16.mxu0 %v690
    %1532 = vmatpush1.bf16.msra.mxu0 %v689
    %1533 = vmatprep.subr.bf16.mxu0 %v693
    %1534 = vmatpush1.bf16.msra.mxu0 %v692
    %1535 = vmatprep.subr.bf16.mxu0 %v696
    %1536 = vmatpush1.bf16.msra.mxu0 %v695
    %1537 = vmatprep.subr.bf16.mxu0 0
    %1538 = vmatpush1.bf16.msra.mxu0 0
    %1539 = vmatprep.subr.bf16.mxu0 0
    %1540 = vmatpush1.bf16.msra.mxu0 0
    %1541 = vmatprep.subr.bf16.mxu0 0
    %1542 = vmatpush1.bf16.msra.mxu0 0
    %1543 = vmatprep.subr.bf16.mxu0 0
    %1544 = vmatpush1.bf16.msra.mxu0 0
    %1545 = vmatprep.subr.bf16.mxu0 0
    %1546 = vmatpush1.bf16.msra.mxu0 0
    %1547 = vmatprep.subr.bf16.mxu0 0
    %1548 = vmatpush1.bf16.msra.mxu0 0
    %1549 = vmatprep.subr.bf16.mxu0 0
    %1550 = vmatpush1.bf16.msra.mxu0 0
    %1551 = vmatprep.subr.bf16.mxu0 0
    %1552 = vmatpush1.bf16.msra.mxu0 0
    %1553 = vmatprep.mubr.bf16.mxu0 0
    %1554 = vmatmul.mubr.bf16.gmra.mrb[0].mxu0 %v1519
    %v1555 = vpop.f32.mrb[0].mxu0
    %v1556 = vadd.f32 %v582, %v1555
    %v1557 = vpop.f32.mrb[0].mxu0
    %v1558 = vadd.f32 %v586, %v1557
    %v1559 = vpop.f32.mrb[0].mxu0
    %v1560 = vpop.f32.mrb[0].mxu0
    %1561 = vdwg.mxu0
    %1562 = vmatprep.subr.bf16.mxu0 0
    %1563 = vmatpush1.bf16.msra.mxu0 %v676
    %1564 = vmatprep.subr.bf16.mxu0 0
    %1565 = vmatpush1.bf16.msra.mxu0 %v679
    %1566 = vmatprep.subr.bf16.mxu0 0
    %1567 = vmatpush1.bf16.msra.mxu0 %v682
    %1568 = vmatprep.subr.bf16.mxu0 0
    %1569 = vmatpush1.bf16.msra.mxu0 %v685
    %1570 = vmatprep.subr.bf16.mxu0 0
    %1571 = vmatpush1.bf16.msra.mxu0 %v688
    %1572 = vmatprep.subr.bf16.mxu0 0
    %1573 = vmatpush1.bf16.msra.mxu0 %v691
    %1574 = vmatprep.subr.bf16.mxu0 0
    %1575 = vmatpush1.bf16.msra.mxu0 %v694
    %1576 = vmatprep.subr.bf16.mxu0 0
    %1577 = vmatpush1.bf16.msra.mxu0 %v697
    %1578 = vmatprep.subr.bf16.mxu0 0
    %1579 = vmatpush1.bf16.msra.mxu0 0
    %1580 = vmatprep.subr.bf16.mxu0 0
    %1581 = vmatpush1.bf16.msra.mxu0 0
    %1582 = vmatprep.subr.bf16.mxu0 0
    %1583 = vmatpush1.bf16.msra.mxu0 0
    %1584 = vmatprep.subr.bf16.mxu0 0
    %1585 = vmatpush1.bf16.msra.mxu0 0
    %1586 = vmatprep.subr.bf16.mxu0 0
    %1587 = vmatpush1.bf16.msra.mxu0 0
    %1588 = vmatprep.subr.bf16.mxu0 0
    %1589 = vmatpush1.bf16.msra.mxu0 0
    %1590 = vmatprep.subr.bf16.mxu0 0
    %1591 = vmatpush1.bf16.msra.mxu0 0
    %1592 = vmatprep.subr.bf16.mxu0 0
    %1593 = vmatpush1.bf16.msra.mxu0 0
    %1594 = vmatprep.mubr.bf16.mxu0 0
    %1595 = vmatmul.mubr.bf16.gmra.mrb[0].mxu0 %v1519
    %v1596 = vpop.f32.mrb[0].mxu0
    %v1597 = vadd.f32 %v590, %v1596
    %v1598 = vpop.f32.mrb[0].mxu0
    %v1599 = vpop.f32.mrb[0].mxu0
    %v1600 = vpop.f32.mrb[0].mxu0
    %1601 = vdwg.mxu0
    %v1603 = vrot.slane %v1556, 2
    %v1605 = vadd.f32 %v500, %v1603
    %v1606 = vxor.u32 %v1605, 2147483648
    %v1607 = vmul.f32 %v1606, 1.442695
    %v1608 = vpow.pop %v1607
    %v1609 = vadd.f32 %v1608, 1.0
    %v1610 = vrcp.pop %v1609
    %v1611 = vmul.f32 1.0, %v1610
    %v1613 = vrot.slane %v1558, 2
    %v1615 = vadd.f32 %v502, %v1613
    %v1616 = vxor.u32 %v1615, 2147483648
    %v1617 = vmul.f32 %v1616, 1.442695
    %v1618 = vpow.pop %v1617
    %v1619 = vadd.f32 %v1618, 1.0
    %v1620 = vrcp.pop %v1619
    %v1621 = vmul.f32 1.0, %v1620
    %v1623 = vrot.slane %v1597, 2
    %v1625 = vmul.f32 %v1611, %v1623
    %v1626 = vadd.f32 %v542, %v1625
    %v1627 = vtanh.pop %v1626
    %v1628 = vsub.f32 1.0, %v1621
    %v1629 = vmul.f32 %v1628, %v1627
    %v1631 = vrot.slane %v1516, 6
    %v1633 = vmul.f32 %v1621, %v1631
    %v1634 = vadd.f32 %v1629, %v1633
    %vm1635 = vcmask 1041408
    %v1636 = vsel %vm1635, %v823, %v938
    %vm1637 = vcmask 1043456
    %v1638 = vsel %vm1637, %v1636, %v1056
    %vm1639 = vcmask 1045504
    %v1640 = vsel %vm1639, %v1638, %v1174
    %v1641 = vsel %vm1635, %v1283, %v1398
    %v1642 = vsel %vm1637, %v1641, %v1516
    %v1643 = vsel %vm1639, %v1642, %v1634
    %v1644 = vld [vmem:[#allocation2 + $0x20] sm:$0xf]
    %v1645 = vld [vmem:[#allocation2 + $0x4c] sm:$0xf]
    %v1646 = vld [vmem:[#allocation2 + $0x78] sm:$0xf]
    %v1647 = vld [vmem:[#allocation2 + $0xa4] sm:$0xf]
    %v1648 = vld [vmem:[#allocation2 + $0xd0] sm:$0xf]
    %v1649 = vld [vmem:[#allocation2 + $0xfc] sm:$0xf]
    %v1650 = vld [vmem:[#allocation2 + $0x128] sm:$0xf]
    %v1651 = vld [vmem:[#allocation2 + $0x154] sm:$0xf]
    %v1652 = vld [vmem:[#allocation2 + $0x180] sm:$0xf]
    %v1653 = vld [vmem:[#allocation2 + $0x1ac] sm:$0xf]
    %v1654 = vld [vmem:[#allocation2 + $0x1d8] sm:$0xf]
    %v1655 = vld [vmem:[#allocation2 + $0x204] sm:$0xf]
    %v1656 = vld [vmem:[#allocation2 + $0x230] sm:$0xf]
    %v1657 = vld [vmem:[#allocation2 + $0x25c] sm:$0xf]
    %v1658 = vld [vmem:[#allocation2 + $0x288] sm:$0xf]
    %v1659 = vld [vmem:[#allocation2 + $0x2b4] sm:$0xf]
    %v1660 = vpack.c.bf16 %v1643, %v1640
    %v1661 = vld [vmem:[%s3 + $0x8] sm:$0x1]
    %v1663 = vlaneseq
    %v1664 = vshrl.u32 %v1663, 7
    %v1665 = vsub.s32 0, %v1664
    %v1666 = vrot.slane %v1661, %v1665
    %v1684 = vunpack.c.l.b16 %v1644
    %v1685 = vunpack.c.l.b16 %v1645
    %v1686 = vunpack.c.l.b16 %v1646
    %v1687 = vunpack.c.l.b16 %v1647
    %v1688 = vunpack.c.l.b16 %v1648
    %v1689 = vunpack.c.l.b16 %v1649
    %v1690 = vunpack.c.l.b16 %v1650
    %v1691 = vunpack.c.l.b16 %v1651
    %v1692 = vunpack.c.l.b16 %v1652
    %v1693 = vunpack.c.l.b16 %v1653
    %v1694 = vunpack.c.l.b16 %v1654
    %v1695 = vunpack.c.l.b16 %v1655
    %v1696 = vunpack.c.l.b16 %v1656
    %v1697 = vunpack.c.l.b16 %v1657
    %v1698 = vunpack.c.l.b16 %v1658
    %v1699 = vunpack.c.l.b16 %v1659
    %v1700 = vpack.c.b16 %v1685, %v1684
    %v1701 = vpack.c.b16 %v1687, %v1686
    %v1702 = vpack.c.b16 %v1689, %v1688
    %v1703 = vpack.c.b16 %v1691, %v1690
    %v1704 = vpack.c.b16 %v1693, %v1692
    %v1705 = vpack.c.b16 %v1695, %v1694
    %v1706 = vpack.c.b16 %v1697, %v1696
    %v1707 = vpack.c.b16 %v1699, %v1698
    %1716 = vmatprep.subr.bf16.mxu0 0
    %1717 = vmatpush1.bf16.msra.mxu0 %v1700
    %1718 = vmatprep.subr.bf16.mxu0 0
    %1719 = vmatpush1.bf16.msra.mxu0 %v1701
    %1720 = vmatprep.subr.bf16.mxu0 0
    %1721 = vmatpush1.bf16.msra.mxu0 %v1702
    %1722 = vmatprep.subr.bf16.mxu0 0
    %1723 = vmatpush1.bf16.msra.mxu0 %v1703
    %1724 = vmatprep.subr.bf16.mxu0 0
    %1725 = vmatpush1.bf16.msra.mxu0 %v1704
    %1726 = vmatprep.subr.bf16.mxu0 0
    %1727 = vmatpush1.bf16.msra.mxu0 %v1705
    %1728 = vmatprep.subr.bf16.mxu0 0
    %1729 = vmatpush1.bf16.msra.mxu0 %v1706
    %1730 = vmatprep.subr.bf16.mxu0 0
    %1731 = vmatpush1.bf16.msra.mxu0 %v1707
    %1732 = vmatprep.subr.bf16.mxu0 0
    %1733 = vmatpush1.bf16.msra.mxu0 0
    %1734 = vmatprep.subr.bf16.mxu0 0
    %1735 = vmatpush1.bf16.msra.mxu0 0
    %1736 = vmatprep.subr.bf16.mxu0 0
    %1737 = vmatpush1.bf16.msra.mxu0 0
    %1738 = vmatprep.subr.bf16.mxu0 0
    %1739 = vmatpush1.bf16.msra.mxu0 0
    %1740 = vmatprep.subr.bf16.mxu0 0
    %1741 = vmatpush1.bf16.msra.mxu0 0
    %1742 = vmatprep.subr.bf16.mxu0 0
    %1743 = vmatpush1.bf16.msra.mxu0 0
    %1744 = vmatprep.subr.bf16.mxu0 0
    %1745 = vmatpush1.bf16.msra.mxu0 0
    %1746 = vmatprep.subr.bf16.mxu0 0
    %1747 = vmatpush1.bf16.msra.mxu0 0
    %1748 = vmatprep.mubr.bf16.mxu0 0
    %1749 = vmatmul.mubr.bf16.gmra.mrb[0].mxu0 %v1660
    %v1750 = vpop.f32.mrb[0].mxu0
    %v1751 = vadd.f32 %v1666, %v1750
    %v1752 = vpop.f32.mrb[0].mxu0
    %v1753 = vpop.f32.mrb[0].mxu0
    %v1754 = vadd.f32 %v1666, %v1753
    %v1755 = vpop.f32.mrb[0].mxu0
    %1756 = vdwg.mxu0
    %v1757 = vmax.f32 %v1751, 0.0
    %v1758 = vmax.f32 %v1754, 0.0
    %v1759 = vld [vmem:[#allocation2 + $0x24] sm:$0xff]
    %v1760 = vld [vmem:[#allocation2 + $0x50] sm:$0xff]
    %v1761 = vld [vmem:[#allocation2 + $0x7c] sm:$0xff]
    %v1762 = vld [vmem:[#allocation2 + $0xa8] sm:$0xff]
    %v1763 = vld [vmem:[#allocation2 + $0xd4] sm:$0xff]
    %v1764 = vld [vmem:[#allocation2 + $0x100] sm:$0xff]
    %v1765 = vld [vmem:[#allocation2 + $0x12c] sm:$0xff]
    %v1766 = vld [vmem:[#allocation2 + $0x158] sm:$0xff]
    %v1767 = vld [vmem:[#allocation2 + $0x184] sm:$0xff]
    %v1768 = vld [vmem:[#allocation2 + $0x1b0] sm:$0xff]
    %v1769 = vld [vmem:[#allocation2 + $0x1dc] sm:$0xff]
    %v1770 = vld [vmem:[#allocation2 + $0x208] sm:$0xff]
    %v1771 = vld [vmem:[#allocation2 + $0x234] sm:$0xff]
    %v1772 = vld [vmem:[#allocation2 + $0x260] sm:$0xff]
    %v1773 = vld [vmem:[#allocation2 + $0x28c] sm:$0xff]
    %v1774 = vld [vmem:[#allocation2 + $0x2b8] sm:$0xff]
    %v1775 = vpack.c.bf16 %v1758, %v1757
    %v1776 = vld [vmem:[%s3 + $0x9] sm:$0x3]
    %v1778 = vlaneseq
    %v1779 = vshrl.u32 %v1778, 7
    %v1780 = vsub.s32 0, %v1779
    %v1781 = vrot.slane %v1776, %v1780
    %v1782 = vlaneseq
    %v1783 = vshrl.u32 %v1782, 7
    %v1784 = vsub.s32 1, %v1783
    %v1785 = vrot.slane %v1776, %v1784
    %v1804 = vunpack.c.l.b16 %v1759
    %v1805 = vunpack.c.h.b16 %v1759
    %v1806 = vunpack.c.l.b16 %v1760
    %v1807 = vunpack.c.h.b16 %v1760
    %v1808 = vunpack.c.l.b16 %v1761
    %v1809 = vunpack.c.h.b16 %v1761
    %v1810 = vunpack.c.l.b16 %v1762
    %v1811 = vunpack.c.h.b16 %v1762
    %v1812 = vunpack.c.l.b16 %v1763
    %v1813 = vunpack.c.h.b16 %v1763
    %v1814 = vunpack.c.l.b16 %v1764
    %v1815 = vunpack.c.h.b16 %v1764
    %v1816 = vunpack.c.l.b16 %v1765
    %v1817 = vunpack.c.h.b16 %v1765
    %v1818 = vunpack.c.l.b16 %v1766
    %v1819 = vunpack.c.h.b16 %v1766
    %v1820 = vunpack.c.l.b16 %v1767
    %v1821 = vunpack.c.h.b16 %v1767
    %v1822 = vunpack.c.l.b16 %v1768
    %v1823 = vunpack.c.h.b16 %v1768
    %v1824 = vunpack.c.l.b16 %v1769
    %v1825 = vunpack.c.h.b16 %v1769
    %v1826 = vunpack.c.l.b16 %v1770
    %v1827 = vunpack.c.h.b16 %v1770
    %v1828 = vunpack.c.l.b16 %v1771
    %v1829 = vunpack.c.h.b16 %v1771
    %v1830 = vunpack.c.l.b16 %v1772
    %v1831 = vunpack.c.h.b16 %v1772
    %v1832 = vunpack.c.l.b16 %v1773
    %v1833 = vunpack.c.h.b16 %v1773
    %v1834 = vunpack.c.l.b16 %v1774
    %v1835 = vunpack.c.h.b16 %v1774
    %v1836 = vpack.c.b16 %v1806, %v1804
    %v1837 = vpack.c.b16 %v1807, %v1805
    %v1838 = vpack.c.b16 %v1810, %v1808
    %v1839 = vpack.c.b16 %v1811, %v1809
    %v1840 = vpack.c.b16 %v1814, %v1812
    %v1841 = vpack.c.b16 %v1815, %v1813
    %v1842 = vpack.c.b16 %v1818, %v1816
    %v1843 = vpack.c.b16 %v1819, %v1817
    %v1844 = vpack.c.b16 %v1822, %v1820
    %v1845 = vpack.c.b16 %v1823, %v1821
    %v1846 = vpack.c.b16 %v1826, %v1824
    %v1847 = vpack.c.b16 %v1827, %v1825
    %v1848 = vpack.c.b16 %v1830, %v1828
    %v1849 = vpack.c.b16 %v1831, %v1829
    %v1850 = vpack.c.b16 %v1834, %v1832
    %v1851 = vpack.c.b16 %v1835, %v1833
    %1868 = vmatprep.subr.bf16.mxu0 %v1837
    %1869 = vmatpush1.bf16.msra.mxu0 %v1836
    %1870 = vmatprep.subr.bf16.mxu0 %v1839
    %1871 = vmatpush1.bf16.msra.mxu0 %v1838
    %1872 = vmatprep.subr.bf16.mxu0 %v1841
    %1873 = vmatpush1.bf16.msra.mxu0 %v1840
    %1874 = vmatprep.subr.bf16.mxu0 %v1843
    %1875 = vmatpush1.bf16.msra.mxu0 %v1842
    %1876 = vmatprep.subr.bf16.mxu0 %v1845
    %1877 = vmatpush1.bf16.msra.mxu0 %v1844
    %1878 = vmatprep.subr.bf16.mxu0 %v1847
    %1879 = vmatpush1.bf16.msra.mxu0 %v1846
    %1880 = vmatprep.subr.bf16.mxu0 %v1849
    %1881 = vmatpush1.bf16.msra.mxu0 %v1848
    %1882 = vmatprep.subr.bf16.mxu0 %v1851
    %1883 = vmatpush1.bf16.msra.mxu0 %v1850
    %1884 = vmatprep.subr.bf16.mxu0 0
    %1885 = vmatpush1.bf16.msra.mxu0 0
    %1886 = vmatprep.subr.bf16.mxu0 0
    %1887 = vmatpush1.bf16.msra.mxu0 0
    %1888 = vmatprep.subr.bf16.mxu0 0
    %1889 = vmatpush1.bf16.msra.mxu0 0
    %1890 = vmatprep.subr.bf16.mxu0 0
    %1891 = vmatpush1.bf16.msra.mxu0 0
    %1892 = vmatprep.subr.bf16.mxu0 0
    %1893 = vmatpush1.bf16.msra.mxu0 0
    %1894 = vmatprep.subr.bf16.mxu0 0
    %1895 = vmatpush1.bf16.msra.mxu0 0
    %1896 = vmatprep.subr.bf16.mxu0 0
    %1897 = vmatpush1.bf16.msra.mxu0 0
    %1898 = vmatprep.subr.bf16.mxu0 0
    %1899 = vmatpush1.bf16.msra.mxu0 0
    %1900 = vmatprep.mubr.bf16.mxu0 0
    %1901 = vmatmul.mubr.bf16.gmra.mrb[0].mxu0 %v1775
    %v1902 = vpop.f32.mrb[0].mxu0
    %v1903 = vadd.f32 %v1781, %v1902
    %v1904 = vpop.f32.mrb[0].mxu0
    %v1905 = vadd.f32 %v1785, %v1904
    %v1906 = vpop.f32.mrb[0].mxu0
    %v1907 = vadd.f32 %v1781, %v1906
    %v1908 = vpop.f32.mrb[0].mxu0
    %v1909 = vadd.f32 %v1785, %v1908
    %1910 = vdwg.mxu0
    %vm1911 = vcmp.gt.f32.partialorder %v1905, 0.0
    %vm1912 = vcmp.gt.f32.partialorder %v1909, 0.0
    %v1913 = vadd.f32 %v1905, 1.0
    %v1914 = vadd.f32 %v1909, 1.0
    %v1915 = vmul.f32 %v1905, 1.442695
    %v1916 = vpow.pop %v1915
    %v1917 = vmul.f32 %v1909, 1.442695
    %v1918 = vpow.pop %v1917
    %v1919 = vsel %vm1911, %v1913, %v1916
    %v1920 = vsel %vm1912, %v1914, %v1918
    %1921 = vst [vmem:[%s4] sm:$0xff] %v1903
    %1922 = vst [vmem:[%s4 + $0x8] sm:$0xff] %v1919
    %1923 = vst [vmem:[%s4 + $0x10] sm:$0xff] %v1907
    %1924 = vst [vmem:[%s4 + $0x18] sm:$0xff] %v1920
    // Predicated region
    $region22: #{rnn_baseline_forward.1} parent=1 // pred_check
      _
    $region23: #{rnn_baseline_forward.1} parent=1 // pred_check_branch
      %1926 = sbr.rel (0) target = $region25
    $region24: #{rnn_baseline_forward.1} parent=1 // pred_region
      _
    $region25: #{rnn_baseline_forward.1} parent=1 // pred_fallthru
      _
    // Predicated region
    $region26: #{rnn_baseline_forward.1} parent=1 // pred_check
      _
    $region27: #{rnn_baseline_forward.1} parent=1 // pred_check_branch
      %1928 = sbr.rel (0) target = $region29
    $region28: #{rnn_baseline_forward.1} parent=1 // pred_region
      _
    $region29: #{rnn_baseline_forward.1} parent=1 // pred_fallthru
      _
    %1929 = vsyncpa [#allocation3], 1

</llo_original>
